<compile_context>
chip_gen: v7x
topology: tpu7x:2x2x1
jax: 0.10.0
libtpu: 0.0.40
codegen_flags: <defaults>
</compile_context>

<pallas_src>
import functools

import jax
import jax.numpy as jnp
from jax.experimental import pallas as pl
from jax.experimental.pallas import tpu as pltpu

LANE = 128


def _round_up(v, m):
    return ((v + m - 1) // m) * m


def _pick_tile(dim, candidates=(512, 256, 128)):
    # dims are pre-padded to multiples of 128, so this always returns >=128.
    for c in candidates:
        if dim % c == 0:
            return c
    return dim


# ---------------------------------------------------------------------------
# Generic tiled matmul:  out = act(A @ B + bias)
# ---------------------------------------------------------------------------
def _linear_kernel(a_ref, b_ref, bias_ref, o_ref, acc_ref, *, relu):
    k = pl.program_id(1)

    @pl.when(k == 0)
    def _():
        acc_ref[...] = jnp.zeros_like(acc_ref)

    acc_ref[...] += jnp.dot(a_ref[...], b_ref[...],
                            preferred_element_type=jnp.float32)

    @pl.when(k == pl.num_programs(1) - 1)
    def _():
        out = acc_ref[...] + bias_ref[...]
        if relu:
            out = jnp.maximum(out, 0.0)
        o_ref[...] = out.astype(o_ref.dtype)


def matmul_bias_act(a, b, bias, *, relu, out_dtype):
    """a: (M, K) bf16, b: (K, N) bf16, bias: (1, N) f32 -> (M, N) out_dtype."""
    m, k = a.shape
    _, n = b.shape
    tm = _pick_tile(m)
    tk = _pick_tile(k)
    grid = (m // tm, k // tk)
    return pl.pallas_call(
        functools.partial(_linear_kernel, relu=relu),
        out_shape=jax.ShapeDtypeStruct((m, n), out_dtype),
        grid_spec=pltpu.PrefetchScalarGridSpec(
            num_scalar_prefetch=0,
            grid=grid,
            in_specs=[
                pl.BlockSpec((tm, tk), lambda i, kk: (i, kk)),
                pl.BlockSpec((tk, n), lambda i, kk: (kk, 0)),
                pl.BlockSpec((1, n), lambda i, kk: (0, 0)),
            ],
            out_specs=pl.BlockSpec((tm, n), lambda i, kk: (i, 0)),
            scratch_shapes=[pltpu.VMEM((tm, n), jnp.float32)],
        ),
        compiler_params=pltpu.CompilerParams(
            dimension_semantics=("parallel", "arbitrary")),
    )(a, b, bias)


def gcn_layer(a_hat, x, w, b):
    """relu(A_hat @ (X @ W) + b); bf16 operands, f32 accumulation."""
    zero_bias = jnp.zeros((1, w.shape[1]), jnp.float32)
    h = matmul_bias_act(x, w, zero_bias, relu=False, out_dtype=jnp.bfloat16)
    return matmul_bias_act(a_hat, h, b, relu=True, out_dtype=jnp.bfloat16)


# ---------------------------------------------------------------------------
# Fused masked mean-pool over nodes + classifier Linear
# ---------------------------------------------------------------------------
def _pool_mlp_kernel(x_ref, w_ref, bias_ref, o_ref, acc_ref, *, n_real, tm):
    i = pl.program_id(0)

    @pl.when(i == 0)
    def _():
        acc_ref[...] = jnp.zeros_like(acc_ref)

    x = x_ref[...].astype(jnp.float32)                       # (tm, H)
    row_ids = jax.lax.broadcasted_iota(jnp.int32, x.shape, 0) + i * tm
    x = jnp.where(row_ids < n_real, x, 0.0)                  # mask padded rows
    acc_ref[...] += jnp.sum(x, axis=0, keepdims=True)        # (1, H)

    @pl.when(i == pl.num_programs(0) - 1)
    def _():
        mean = (acc_ref[...] * (1.0 / n_real)).astype(jnp.bfloat16)   # (1, H)
        mean8 = jnp.broadcast_to(mean, (8, mean.shape[1]))            # sublane-friendly
        out = jnp.dot(mean8, w_ref[...], preferred_element_type=jnp.float32)
        o_ref[...] = out + bias_ref[...]


def meanpool_linear(x, w, bias, *, n_real):
    """x: (Npad, H) bf16, w: (H, C) bf16, bias: (1, C) f32 -> (8, C) f32 (row 0 valid)."""
    n_pad, h = x.shape
    _, c = w.shape
    tm = _pick_tile(n_pad)
    return pl.pallas_call(
        functools.partial(_pool_mlp_kernel, n_real=n_real, tm=tm),
        out_shape=jax.ShapeDtypeStruct((8, c), jnp.float32),
        grid_spec=pltpu.PrefetchScalarGridSpec(
            num_scalar_prefetch=0,
            grid=(n_pad // tm,),
            in_specs=[
                pl.BlockSpec((tm, h), lambda i: (i, 0)),
                pl.BlockSpec((h, c), lambda i: (0, 0)),
                pl.BlockSpec((1, c), lambda i: (0, 0)),
            ],
            out_specs=pl.BlockSpec((8, c), lambda i: (0, 0)),
            scratch_shapes=[pltpu.VMEM((1, h), jnp.float32)],
        ),
        compiler_params=pltpu.CompilerParams(
            dimension_semantics=("arbitrary",)),
    )(x, w, bias)


# ---------------------------------------------------------------------------
# Full MPRModel forward (pooling=False path)
# ---------------------------------------------------------------------------
@functools.partial(jax.jit, static_argnames=("n_real", "num_classes"))
def mpr_model_forward(a_hat, x, embed_params, cls_params, n_real, num_classes):
    h = x
    for (w1, b1, w2, b2) in embed_params:
        h = gcn_layer(a_hat, h, w1, b1)   # GEmbedNet.conv1 + relu
        h = gcn_layer(a_hat, h, w2, b2)   # GEmbedNet.conv2 + relu
        # TODO(synk): MPRPooling omitted here (see module-level TODO).
    cw1, cb1, cw2, cb2, wm, bm = cls_params
    h = gcn_layer(a_hat, h, cw1, cb1)     # GClassifier.conv1 + relu
    h = gcn_layer(a_hat, h, cw2, cb2)     # GClassifier.conv2 + relu
    # F.dropout at inference == identity.
    logits = meanpool_linear(h, wm, bm, n_real=n_real)
    return logits[0, :num_classes]


# ---------------------------------------------------------------------------
# Host-side glue (plain JAX): adjacency construction, padding, params, reference
# ---------------------------------------------------------------------------
def build_normalized_adjacency(edge_index, num_nodes):
    """Dense A_hat = D^-1/2 (A + I) D^-1/2; A[dst, src] = 1 per edge."""
    src, dst = edge_index[0], edge_index[1]
    a = jnp.zeros((num_nodes, num_nodes), dtype=jnp.float32)
    a = a.at[dst, src].set(1.0)
    a = jnp.maximum(a, jnp.eye(num_nodes, dtype=jnp.float32))  # self loops
    deg = a.sum(axis=1)
    d_inv_sqrt = jnp.where(deg > 0, 1.0 / jnp.sqrt(deg), 0.0)
    return d_inv_sqrt[:, None] * a * d_inv_sqrt[None, :]


def pad2(x, rows, cols):
    return jnp.pad(x, ((0, rows - x.shape[0]), (0, cols - x.shape[1])))


def glorot(key, shape):
    fan_in, fan_out = shape
    limit = jnp.sqrt(6.0 / (fan_in + fan_out))
    return jax.random.uniform(key, shape, jnp.float32, -limit, limit)


def reference_forward(a_hat_p, x_p, embed_params, cls_params, n_real, num_classes):
    """Pure-JAX reference with identical bf16 casts and f32 accumulation."""
    def gcn(h, w, b):
        t = jnp.dot(h, w, preferred_element_type=jnp.float32).astype(jnp.bfloat16)
        t = jnp.dot(a_hat_p, t, preferred_element_type=jnp.float32) + b
        return jnp.maximum(t, 0.0).astype(jnp.bfloat16)

    h = x_p
    for (w1, b1, w2, b2) in embed_params:
        h = gcn(h, w1, b1)
        h = gcn(h, w2, b2)
    cw1, cb1, cw2, cb2, wm, bm = cls_params
    h = gcn(h, cw1, cb1)
    h = gcn(h, cw2, cb2)
    mean = jnp.mean(h[:n_real].astype(jnp.float32), axis=0, keepdims=True)
    out = jnp.dot(mean.astype(jnp.bfloat16), wm,
                  preferred_element_type=jnp.float32) + bm
    return out[0, :num_classes]


if __name__ == "__main__":
    key = jax.random.PRNGKey(0)
    keys = jax.random.split(key, 24)

    # Small shapes consistent with MPRModel (module defaults 89/128, scaled down).
    num_nodes = 24
    num_node_features = 16
    hidden_dims = [32, 32]      # MPRModel(hidden_dim=[32, 32], out_nodes=[10, 5], ...)
    num_classes = 4
    num_edges = 40

    n_pad = _round_up(num_nodes, LANE)
    f_pad = _round_up(num_node_features, LANE)

    # --- graph + node features ------------------------------------------------
    src = jax.random.randint(keys[0], (num_edges,), 0, num_nodes)
    dst = jax.random.randint(keys[1], (num_edges,), 0, num_nodes)
    edge_index = jnp.stack(
        [jnp.concatenate([src, dst]), jnp.concatenate([dst, src])], axis=0
    ).astype(jnp.int32)
    x = jax.random.normal(keys[2], (num_nodes, num_node_features), jnp.float32)

    a_hat = build_normalized_adjacency(edge_index, num_nodes)
    a_hat_p = pad2(a_hat, n_pad, n_pad).astype(jnp.bfloat16)
    x_p = pad2(x, n_pad, f_pad).astype(jnp.bfloat16)

    # --- parameters (GCNConv: W (Fin,H) + b (H,);  Linear: W (H,C) + b (C,)) ---
    kidx = 3
    embed_params = []
    in_dim = num_node_features
    for hdim in hidden_dims:
        ip, hp = _round_up(in_dim, LANE), _round_up(hdim, LANE)
        w1 = glorot(keys[kidx], (in_dim, hdim)); kidx += 1
        b1 = 0.1 * jax.random.normal(keys[kidx], (1, hdim), jnp.float32); kidx += 1
        w2 = glorot(keys[kidx], (hdim, hdim)); kidx += 1
        b2 = 0.1 * jax.random.normal(keys[kidx], (1, hdim), jnp.float32); kidx += 1
        embed_params.append((
            pad2(w1, ip, hp).astype(jnp.bfloat16),
            pad2(b1, 1, hp).astype(jnp.float32),
            pad2(w2, hp, hp).astype(jnp.bfloat16),
            pad2(b2, 1, hp).astype(jnp.float32),
        ))
        in_dim = hdim
    embed_params = tuple(embed_params)

    hdim = hidden_dims[-1]
    hp = _round_up(hdim, LANE)
    cp = _round_up(num_classes, LANE)
    cw1 = pad2(glorot(keys[kidx], (hdim, hdim)), hp, hp).astype(jnp.bfloat16); kidx += 1
    cb1 = pad2(0.1 * jax.random.normal(keys[kidx], (1, hdim), jnp.float32), 1, hp); kidx += 1
    cw2 = pad2(glorot(keys[kidx], (hdim, hdim)), hp, hp).astype(jnp.bfloat16); kidx += 1
    cb2 = pad2(0.1 * jax.random.normal(keys[kidx], (1, hdim), jnp.float32), 1, hp); kidx += 1
    wm = pad2(glorot(keys[kidx], (hdim, num_classes)), hp, cp).astype(jnp.bfloat16); kidx += 1
    bm = pad2(0.1 * jax.random.normal(keys[kidx], (1, num_classes), jnp.float32), 1, cp); kidx += 1
    cls_params = (cw1, cb1.astype(jnp.float32), cw2, cb2.astype(jnp.float32),
                  wm, bm.astype(jnp.float32))

    # --- run kernels + check against reference --------------------------------
    logits = mpr_model_forward(a_hat_p, x_p, embed_params, cls_params,
                               n_real=num_nodes, num_classes=num_classes)
    logits = jax.block_until_ready(logits)

    ref = reference_forward(a_hat_p, x_p, embed_params, cls_params,
                            num_nodes, num_classes)

    assert logits.shape == (num_classes,)
    assert jnp.allclose(logits, ref, atol=2e-2, rtol=2e-2), (logits, ref)

    print("KERNEL_OK")
</pallas_src>

<mosaic_0001>
module attributes {stable_mosaic.version = 11 : i64} {
  func.func @_linear_kernel(%arg0: i32, %arg1: i32, %arg2: memref<128x128xbf16, #tpu.memory_space<vmem>>, %arg3: memref<128x128xbf16, #tpu.memory_space<vmem>>, %arg4: memref<1x128xf32, #tpu.memory_space<vmem>>, %arg5: memref<128x128xbf16, #tpu.memory_space<vmem>>, %arg6: memref<128x128xf32, #tpu.memory_space<vmem>>) attributes {dimension_semantics = [#tpu.dimension_semantics<parallel>, #tpu.dimension_semantics<arbitrary>], iteration_bounds = array<i64: 1, 1>, scalar_prefetch = 0 : i64, scratch_operands = 1 : i64, tpu.core_type = #tpu.core_type<tc>, window_params = [{transform_indices = @transform_0, window_bounds = array<i64: 128, 128>}, {transform_indices = @transform_1, window_bounds = array<i64: 128, 128>}, {pipeline_mode = #tpu.pipeline_mode<synchronous>, transform_indices = @transform_2, window_bounds = array<i64: 1, 128>}, {transform_indices = @transform_3, window_bounds = array<i64: 128, 128>}]} {
    %c0_i32 = arith.constant 0 : i32
    %0 = arith.cmpi eq, %arg1, %c0_i32 : i32
    %1 = arith.extui %0 : i1 to i32
    %c0_i32_0 = arith.constant 0 : i32
    %2 = arith.cmpi ne, %1, %c0_i32_0 : i32
    scf.if %2 {
      %cst_10 = arith.constant 0.000000e+00 : f32
      %12 = vector.broadcast %cst_10 : f32 to vector<128x128xf32>
      %c0_11 = arith.constant 0 : index
      %c0_12 = arith.constant 0 : index
      %13 = vector.load %arg6[%c0_11, %c0_12] : memref<128x128xf32, #tpu.memory_space<vmem>>, vector<128x128xf32>
      tpu.vector_store %arg6[%c0_11, %c0_12], %12 {strides = array<i32>} : memref<128x128xf32, #tpu.memory_space<vmem>>, vector<128x128xf32>,
    } else {
    }
    %c0 = arith.constant 0 : index
    %c0_1 = arith.constant 0 : index
    %3 = vector.load %arg6[%c0, %c0_1] : memref<128x128xf32, #tpu.memory_space<vmem>>, vector<128x128xf32>
    %c0_2 = arith.constant 0 : index
    %c0_3 = arith.constant 0 : index
    %4 = vector.load %arg2[%c0_2, %c0_3] : memref<128x128xbf16, #tpu.memory_space<vmem>>, vector<128x128xbf16>
    %c0_4 = arith.constant 0 : index
    %c0_5 = arith.constant 0 : index
    %5 = vector.load %arg3[%c0_4, %c0_5] : memref<128x128xbf16, #tpu.memory_space<vmem>>, vector<128x128xbf16>
    %cst = arith.constant dense<0.000000e+00> : vector<128x128xf32>
    %6 = tpu.matmul %4, %5, %cst {dimension_numbers = #tpu.dot_dimension_numbers<[1], [0], [0], [1], [0, 0, 1, 1], [], []>} : vector<128x128xbf16>, vector<128x128xbf16>, vector<128x128xf32> -> vector<128x128xf32>
    %7 = arith.addf %3, %6 : vector<128x128xf32>
    %c0_6 = arith.constant 0 : index
    %c0_7 = arith.constant 0 : index
    %8 = vector.load %arg6[%c0_6, %c0_7] : memref<128x128xf32, #tpu.memory_space<vmem>>, vector<128x128xf32>
    tpu.vector_store %arg6[%c0_6, %c0_7], %7 {strides = array<i32>} : memref<128x128xf32, #tpu.memory_space<vmem>>, vector<128x128xf32>,
    %c0_i32_8 = arith.constant 0 : i32
    %9 = arith.cmpi eq, %arg1, %c0_i32_8 : i32
    %10 = arith.extui %9 : i1 to i32
    %c0_i32_9 = arith.constant 0 : i32
    %11 = arith.cmpi ne, %10, %c0_i32_9 : i32
    scf.if %11 {
      %c0_10 = arith.constant 0 : index
      %c0_11 = arith.constant 0 : index
      %12 = vector.load %arg6[%c0_10, %c0_11] : memref<128x128xf32, #tpu.memory_space<vmem>>, vector<128x128xf32>
      %c0_12 = arith.constant 0 : index
      %c0_13 = arith.constant 0 : index
      %13 = vector.load %arg4[%c0_12, %c0_13] : memref<1x128xf32, #tpu.memory_space<vmem>>, vector<1x128xf32>
      %14 = vector.broadcast %13 : vector<1x128xf32> to vector<128x128xf32>
      %15 = arith.addf %12, %14 : vector<128x128xf32>
      %cst_14 = arith.constant 0.000000e+00 : f32
      %16 = vector.broadcast %cst_14 : f32 to vector<128x128xf32>
      %17 = arith.maximumf %15, %16 : vector<128x128xf32>
      %18 = arith.truncf %17 : vector<128x128xf32> to vector<128x128xbf16>
      %c0_15 = arith.constant 0 : index
      %c0_16 = arith.constant 0 : index
      %19 = vector.load %arg5[%c0_15, %c0_16] : memref<128x128xbf16, #tpu.memory_space<vmem>>, vector<128x128xbf16>
      tpu.vector_store %arg5[%c0_15, %c0_16], %18 {strides = array<i32>} : memref<128x128xbf16, #tpu.memory_space<vmem>>, vector<128x128xbf16>,
    } else {
    }
    return
  }
  func.func @transform_0(%arg0: i32, %arg1: i32) -> (i32, i32) {
    %c0_i32 = arith.constant 0 : i32
    return %arg0, %arg1 : i32, i32
  }
  func.func @transform_1(%arg0: i32, %arg1: i32) -> (i32, i32) {
    %c0_i32 = arith.constant 0 : i32
    %c0_i32_0 = arith.constant 0 : i32
    return %arg1, %c0_i32 : i32, i32
  }
  func.func @transform_2(%arg0: i32, %arg1: i32) -> (i32, i32) {
    %c0_i32 = arith.constant 0 : i32
    %c0_i32_0 = arith.constant 0 : i32
    %c0_i32_1 = arith.constant 0 : i32
    return %c0_i32, %c0_i32_0 : i32, i32
  }
  func.func @transform_3(%arg0: i32, %arg1: i32) -> (i32, i32) {
    %c0_i32 = arith.constant 0 : i32
    %c0_i32_0 = arith.constant 0 : i32
    return %arg0, %c0_i32 : i32, i32
  }
}

module attributes {stable_mosaic.version = 11 : i64} {
  func.func @_linear_kernel(%arg0: i32, %arg1: i32, %arg2: memref<128x128xbf16, #tpu.memory_space<vmem>>, %arg3: memref<128x128xbf16, #tpu.memory_space<vmem>>, %arg4: memref<1x128xf32, #tpu.memory_space<vmem>>, %arg5: memref<128x128xbf16, #tpu.memory_space<vmem>>, %arg6: memref<128x128xf32, #tpu.memory_space<vmem>>) attributes {dimension_semantics = [#tpu.dimension_semantics<parallel>, #tpu.dimension_semantics<arbitrary>], iteration_bounds = array<i64: 1, 1>, scalar_prefetch = 0 : i64, scratch_operands = 1 : i64, tpu.core_type = #tpu.core_type<tc>, window_params = [{transform_indices = @transform_0, window_bounds = array<i64: 128, 128>}, {transform_indices = @transform_1, window_bounds = array<i64: 128, 128>}, {pipeline_mode = #tpu.pipeline_mode<synchronous>, transform_indices = @transform_2, window_bounds = array<i64: 1, 128>}, {transform_indices = @transform_3, window_bounds = array<i64: 128, 128>}]} {
    %c0_i32 = arith.constant 0 : i32
    %0 = arith.cmpi eq, %arg1, %c0_i32 : i32
    %1 = arith.extui %0 : i1 to i32
    %c0_i32_0 = arith.constant 0 : i32
    %2 = arith.cmpi ne, %1, %c0_i32_0 : i32
    scf.if %2 {
      %cst_10 = arith.constant 0.000000e+00 : f32
      %12 = vector.broadcast %cst_10 : f32 to vector<128x128xf32>
      %c0_11 = arith.constant 0 : index
      %c0_12 = arith.constant 0 : index
      %13 = vector.load %arg6[%c0_11, %c0_12] : memref<128x128xf32, #tpu.memory_space<vmem>>, vector<128x128xf32>
      tpu.vector_store %arg6[%c0_11, %c0_12], %12 {strides = array<i32>} : memref<128x128xf32, #tpu.memory_space<vmem>>, vector<128x128xf32>,
    } else {
    }
    %c0 = arith.constant 0 : index
    %c0_1 = arith.constant 0 : index
    %3 = vector.load %arg6[%c0, %c0_1] : memref<128x128xf32, #tpu.memory_space<vmem>>, vector<128x128xf32>
    %c0_2 = arith.constant 0 : index
    %c0_3 = arith.constant 0 : index
    %4 = vector.load %arg2[%c0_2, %c0_3] : memref<128x128xbf16, #tpu.memory_space<vmem>>, vector<128x128xbf16>
    %c0_4 = arith.constant 0 : index
    %c0_5 = arith.constant 0 : index
    %5 = vector.load %arg3[%c0_4, %c0_5] : memref<128x128xbf16, #tpu.memory_space<vmem>>, vector<128x128xbf16>
    %cst = arith.constant dense<0.000000e+00> : vector<128x128xf32>
    %6 = tpu.matmul %4, %5, %cst {dimension_numbers = #tpu.dot_dimension_numbers<[1], [0], [0], [1], [0, 0, 1, 1], [], []>} : vector<128x128xbf16>, vector<128x128xbf16>, vector<128x128xf32> -> vector<128x128xf32>
    %7 = arith.addf %3, %6 : vector<128x128xf32>
    %c0_6 = arith.constant 0 : index
    %c0_7 = arith.constant 0 : index
    %8 = vector.load %arg6[%c0_6, %c0_7] : memref<128x128xf32, #tpu.memory_space<vmem>>, vector<128x128xf32>
    tpu.vector_store %arg6[%c0_6, %c0_7], %7 {strides = array<i32>} : memref<128x128xf32, #tpu.memory_space<vmem>>, vector<128x128xf32>,
    %c0_i32_8 = arith.constant 0 : i32
    %9 = arith.cmpi eq, %arg1, %c0_i32_8 : i32
    %10 = arith.extui %9 : i1 to i32
    %c0_i32_9 = arith.constant 0 : i32
    %11 = arith.cmpi ne, %10, %c0_i32_9 : i32
    scf.if %11 {
      %c0_10 = arith.constant 0 : index
      %c0_11 = arith.constant 0 : index
      %12 = vector.load %arg6[%c0_10, %c0_11] : memref<128x128xf32, #tpu.memory_space<vmem>>, vector<128x128xf32>
      %c0_12 = arith.constant 0 : index
      %c0_13 = arith.constant 0 : index
      %13 = vector.load %arg4[%c0_12, %c0_13] : memref<1x128xf32, #tpu.memory_space<vmem>>, vector<1x128xf32>
      %14 = vector.broadcast %13 : vector<1x128xf32> to vector<128x128xf32>
      %15 = arith.addf %12, %14 : vector<128x128xf32>
      %16 = arith.truncf %15 : vector<128x128xf32> to vector<128x128xbf16>
      %c0_14 = arith.constant 0 : index
      %c0_15 = arith.constant 0 : index
      %17 = vector.load %arg5[%c0_14, %c0_15] : memref<128x128xbf16, #tpu.memory_space<vmem>>, vector<128x128xbf16>
      tpu.vector_store %arg5[%c0_14, %c0_15], %16 {strides = array<i32>} : memref<128x128xbf16, #tpu.memory_space<vmem>>, vector<128x128xbf16>,
    } else {
    }
    return
  }
  func.func @transform_0(%arg0: i32, %arg1: i32) -> (i32, i32) {
    %c0_i32 = arith.constant 0 : i32
    return %arg0, %arg1 : i32, i32
  }
  func.func @transform_1(%arg0: i32, %arg1: i32) -> (i32, i32) {
    %c0_i32 = arith.constant 0 : i32
    %c0_i32_0 = arith.constant 0 : i32
    return %arg1, %c0_i32 : i32, i32
  }
  func.func @transform_2(%arg0: i32, %arg1: i32) -> (i32, i32) {
    %c0_i32 = arith.constant 0 : i32
    %c0_i32_0 = arith.constant 0 : i32
    %c0_i32_1 = arith.constant 0 : i32
    return %c0_i32, %c0_i32_0 : i32, i32
  }
  func.func @transform_3(%arg0: i32, %arg1: i32) -> (i32, i32) {
    %c0_i32 = arith.constant 0 : i32
    %c0_i32_0 = arith.constant 0 : i32
    return %arg0, %c0_i32 : i32, i32
  }
}

module attributes {stable_mosaic.version = 11 : i64} {
  func.func @_linear_kernel(%arg0: i32, %arg1: i32, %arg2: memref<128x128xbf16, #tpu.memory_space<vmem>>, %arg3: memref<128x128xbf16, #tpu.memory_space<vmem>>, %arg4: memref<1x128xf32, #tpu.memory_space<vmem>>, %arg5: memref<128x128xbf16, #tpu.memory_space<vmem>>, %arg6: memref<128x128xf32, #tpu.memory_space<vmem>>) attributes {dimension_semantics = [#tpu.dimension_semantics<parallel>, #tpu.dimension_semantics<arbitrary>], iteration_bounds = array<i64: 1, 1>, scalar_prefetch = 0 : i64, scratch_operands = 1 : i64, tpu.core_type = #tpu.core_type<tc>, window_params = [{transform_indices = @transform_0, window_bounds = array<i64: 128, 128>}, {transform_indices = @transform_1, window_bounds = array<i64: 128, 128>}, {pipeline_mode = #tpu.pipeline_mode<synchronous>, transform_indices = @transform_2, window_bounds = array<i64: 1, 128>}, {transform_indices = @transform_3, window_bounds = array<i64: 128, 128>}]} {
    %c0_i32 = arith.constant 0 : i32
    %0 = arith.cmpi eq, %arg1, %c0_i32 : i32
    %1 = arith.extui %0 : i1 to i32
    %c0_i32_0 = arith.constant 0 : i32
    %2 = arith.cmpi ne, %1, %c0_i32_0 : i32
    scf.if %2 {
      %cst_10 = arith.constant 0.000000e+00 : f32
      %12 = vector.broadcast %cst_10 : f32 to vector<128x128xf32>
      %c0_11 = arith.constant 0 : index
      %c0_12 = arith.constant 0 : index
      %13 = vector.load %arg6[%c0_11, %c0_12] : memref<128x128xf32, #tpu.memory_space<vmem>>, vector<128x128xf32>
      tpu.vector_store %arg6[%c0_11, %c0_12], %12 {strides = array<i32>} : memref<128x128xf32, #tpu.memory_space<vmem>>, vector<128x128xf32>,
    } else {
    }
    %c0 = arith.constant 0 : index
    %c0_1 = arith.constant 0 : index
    %3 = vector.load %arg6[%c0, %c0_1] : memref<128x128xf32, #tpu.memory_space<vmem>>, vector<128x128xf32>
    %c0_2 = arith.constant 0 : index
    %c0_3 = arith.constant 0 : index
    %4 = vector.load %arg2[%c0_2, %c0_3] : memref<128x128xbf16, #tpu.memory_space<vmem>>, vector<128x128xbf16>
    %c0_4 = arith.constant 0 : index
    %c0_5 = arith.constant 0 : index
    %5 = vector.load %arg3[%c0_4, %c0_5] : memref<128x128xbf16, #tpu.memory_space<vmem>>, vector<128x128xbf16>
    %cst = arith.constant dense<0.000000e+00> : vector<128x128xf32>
    %6 = tpu.matmul %4, %5, %cst {dimension_numbers = #tpu.dot_dimension_numbers<[1], [0], [0], [1], [0, 0, 1, 1], [], []>} : vector<128x128xbf16>, vector<128x128xbf16>, vector<128x128xf32> -> vector<128x128xf32>
    %7 = arith.addf %3, %6 : vector<128x128xf32>
    %c0_6 = arith.constant 0 : index
    %c0_7 = arith.constant 0 : index
    %8 = vector.load %arg6[%c0_6, %c0_7] : memref<128x128xf32, #tpu.memory_space<vmem>>, vector<128x128xf32>
    tpu.vector_store %arg6[%c0_6, %c0_7], %7 {strides = array<i32>} : memref<128x128xf32, #tpu.memory_space<vmem>>, vector<128x128xf32>,
    %c0_i32_8 = arith.constant 0 : i32
    %9 = arith.cmpi eq, %arg1, %c0_i32_8 : i32
    %10 = arith.extui %9 : i1 to i32
    %c0_i32_9 = arith.constant 0 : i32
    %11 = arith.cmpi ne, %10, %c0_i32_9 : i32
    scf.if %11 {
      %c0_10 = arith.constant 0 : index
      %c0_11 = arith.constant 0 : index
      %12 = vector.load %arg6[%c0_10, %c0_11] : memref<128x128xf32, #tpu.memory_space<vmem>>, vector<128x128xf32>
      %c0_12 = arith.constant 0 : index
      %c0_13 = arith.constant 0 : index
      %13 = vector.load %arg4[%c0_12, %c0_13] : memref<1x128xf32, #tpu.memory_space<vmem>>, vector<1x128xf32>
      %14 = vector.broadcast %13 : vector<1x128xf32> to vector<128x128xf32>
      %15 = arith.addf %12, %14 : vector<128x128xf32>
      %16 = arith.truncf %15 : vector<128x128xf32> to vector<128x128xbf16>
      %c0_14 = arith.constant 0 : index
      %c0_15 = arith.constant 0 : index
      %17 = vector.load %arg5[%c0_14, %c0_15] : memref<128x128xbf16, #tpu.memory_space<vmem>>, vector<128x128xbf16>
      tpu.vector_store %arg5[%c0_14, %c0_15], %16 {strides = array<i32>} : memref<128x128xbf16, #tpu.memory_space<vmem>>, vector<128x128xbf16>,
    } else {
    }
    return
  }
  func.func @transform_0(%arg0: i32, %arg1: i32) -> (i32, i32) {
    %c0_i32 = arith.constant 0 : i32
    return %arg0, %arg1 : i32, i32
  }
  func.func @transform_1(%arg0: i32, %arg1: i32) -> (i32, i32) {
    %c0_i32 = arith.constant 0 : i32
    %c0_i32_0 = arith.constant 0 : i32
    return %arg1, %c0_i32 : i32, i32
  }
  func.func @transform_2(%arg0: i32, %arg1: i32) -> (i32, i32) {
    %c0_i32 = arith.constant 0 : i32
    %c0_i32_0 = arith.constant 0 : i32
    %c0_i32_1 = arith.constant 0 : i32
    return %c0_i32, %c0_i32_0 : i32, i32
  }
  func.func @transform_3(%arg0: i32, %arg1: i32) -> (i32, i32) {
    %c0_i32 = arith.constant 0 : i32
    %c0_i32_0 = arith.constant 0 : i32
    return %arg0, %c0_i32 : i32, i32
  }
}

module attributes {stable_mosaic.version = 11 : i64} {
  func.func @_pool_mlp_kernel(%arg0: i32, %arg1: memref<128x128xbf16, #tpu.memory_space<vmem>>, %arg2: memref<128x128xbf16, #tpu.memory_space<vmem>>, %arg3: memref<1x128xf32, #tpu.memory_space<vmem>>, %arg4: memref<8x128xf32, #tpu.memory_space<vmem>>, %arg5: memref<1x128xf32, #tpu.memory_space<vmem>>) attributes {dimension_semantics = [#tpu.dimension_semantics<arbitrary>], iteration_bounds = array<i64: 1>, scalar_prefetch = 0 : i64, scratch_operands = 1 : i64, tpu.core_type = #tpu.core_type<tc>, window_params = [{transform_indices = @transform_0, window_bounds = array<i64: 128, 128>}, {pipeline_mode = #tpu.pipeline_mode<synchronous>, transform_indices = @transform_1, window_bounds = array<i64: 128, 128>}, {pipeline_mode = #tpu.pipeline_mode<synchronous>, transform_indices = @transform_2, window_bounds = array<i64: 1, 128>}, {pipeline_mode = #tpu.pipeline_mode<synchronous>, transform_indices = @transform_3, window_bounds = array<i64: 8, 128>}]} {
    %c0_i32 = arith.constant 0 : i32
    %0 = arith.cmpi eq, %arg0, %c0_i32 : i32
    %1 = arith.extui %0 : i1 to i32
    %c0_i32_0 = arith.constant 0 : i32
    %2 = arith.cmpi ne, %1, %c0_i32_0 : i32
    scf.if %2 {
      %cst_9 = arith.constant 0.000000e+00 : f32
      %21 = vector.broadcast %cst_9 : f32 to vector<1x128xf32>
      %c0_10 = arith.constant 0 : index
      %c0_11 = arith.constant 0 : index
      %22 = vector.load %arg5[%c0_10, %c0_11] : memref<1x128xf32, #tpu.memory_space<vmem>>, vector<1x128xf32>
      tpu.vector_store %arg5[%c0_10, %c0_11], %21 {strides = array<i32>} : memref<1x128xf32, #tpu.memory_space<vmem>>, vector<1x128xf32>,
    } else {
    }
    %c0 = arith.constant 0 : index
    %c0_1 = arith.constant 0 : index
    %3 = vector.load %arg1[%c0, %c0_1] : memref<128x128xbf16, #tpu.memory_space<vmem>>, vector<128x128xbf16>
    %4 = arith.extf %3 : vector<128x128xbf16> to vector<128x128xf32>
    %5 = tpu.iota {dimensions = array<i32: 0>} : vector<128x128xi32>
    %c128_i32 = arith.constant 128 : i32
    %6 = arith.muli %arg0, %c128_i32 : i32
    %7 = vector.broadcast %6 : i32 to vector<128x128xi32>
    %8 = arith.addi %5, %7 : vector<128x128xi32>
    %c24_i32 = arith.constant 24 : i32
    %9 = vector.broadcast %c24_i32 : i32 to vector<128x128xi32>
    %10 = arith.cmpi slt, %8, %9 : vector<128x128xi32>
    %cst = arith.constant 0.000000e+00 : f32
    %11 = vector.broadcast %cst : f32 to vector<128x128xf32>
    %12 = arith.select %10, %4, %11 : vector<128x128xi1>, vector<128x128xf32>
    %c0_2 = arith.constant 0 : index
    %c0_3 = arith.constant 0 : index
    %13 = vector.load %arg5[%c0_2, %c0_3] : memref<1x128xf32, #tpu.memory_space<vmem>>, vector<1x128xf32>
    %cst_4 = arith.constant dense<0.000000e+00> : vector<128xf32>
    %14 = vector.multi_reduction <add>, %12, %cst_4 [0] : vector<128x128xf32> to vector<128xf32>
    %15 = vector.shape_cast %14 : vector<128xf32> to vector<1x128xf32>
    %16 = arith.addf %13, %15 : vector<1x128xf32>
    %c0_5 = arith.constant 0 : index
    %c0_6 = arith.constant 0 : index
    %17 = vector.load %arg5[%c0_5, %c0_6] : memref<1x128xf32, #tpu.memory_space<vmem>>, vector<1x128xf32>
    tpu.vector_store %arg5[%c0_5, %c0_6], %16 {strides = array<i32>} : memref<1x128xf32, #tpu.memory_space<vmem>>, vector<1x128xf32>,
    %c0_i32_7 = arith.constant 0 : i32
    %18 = arith.cmpi eq, %arg0, %c0_i32_7 : i32
    %19 = arith.extui %18 : i1 to i32
    %c0_i32_8 = arith.constant 0 : i32
    %20 = arith.cmpi ne, %19, %c0_i32_8 : i32
    scf.if %20 {
      %c0_9 = arith.constant 0 : index
      %c0_10 = arith.constant 0 : index
      %21 = vector.load %arg5[%c0_9, %c0_10] : memref<1x128xf32, #tpu.memory_space<vmem>>, vector<1x128xf32>
      %cst_11 = arith.constant 0.0416666679 : f32
      %22 = vector.broadcast %cst_11 : f32 to vector<1x128xf32>
      %23 = arith.mulf %21, %22 : vector<1x128xf32>
      %24 = arith.truncf %23 : vector<1x128xf32> to vector<1x128xbf16>
      %25 = vector.shape_cast %24 : vector<1x128xbf16> to vector<1x128xbf16>
      %26 = vector.broadcast %25 : vector<1x128xbf16> to vector<8x128xbf16>
      %c0_12 = arith.constant 0 : index
      %c0_13 = arith.constant 0 : index
      %27 = vector.load %arg2[%c0_12, %c0_13] : memref<128x128xbf16, #tpu.memory_space<vmem>>, vector<128x128xbf16>
      %cst_14 = arith.constant dense<0.000000e+00> : vector<8x128xf32>
      %28 = tpu.matmul %26, %27, %cst_14 {dimension_numbers = #tpu.dot_dimension_numbers<[1], [0], [0], [1], [0, 0, 1, 1], [], []>} : vector<8x128xbf16>, vector<128x128xbf16>, vector<8x128xf32> -> vector<8x128xf32>
      %c0_15 = arith.constant 0 : index
      %c0_16 = arith.constant 0 : index
      %29 = vector.load %arg3[%c0_15, %c0_16] : memref<1x128xf32, #tpu.memory_space<vmem>>, vector<1x128xf32>
      %30 = vector.broadcast %29 : vector<1x128xf32> to vector<8x128xf32>
      %31 = arith.addf %28, %30 : vector<8x128xf32>
      %c0_17 = arith.constant 0 : index
      %c0_18 = arith.constant 0 : index
      %32 = vector.load %arg4[%c0_17, %c0_18] : memref<8x128xf32, #tpu.memory_space<vmem>>, vector<8x128xf32>
      tpu.vector_store %arg4[%c0_17, %c0_18], %31 {strides = array<i32>} : memref<8x128xf32, #tpu.memory_space<vmem>>, vector<8x128xf32>,
    } else {
    }
    return
  }
  func.func @transform_0(%arg0: i32) -> (i32, i32) {
    %c0_i32 = arith.constant 0 : i32
    %c0_i32_0 = arith.constant 0 : i32
    return %arg0, %c0_i32 : i32, i32
  }
  func.func @transform_1(%arg0: i32) -> (i32, i32) {
    %c0_i32 = arith.constant 0 : i32
    %c0_i32_0 = arith.constant 0 : i32
    %c0_i32_1 = arith.constant 0 : i32
    return %c0_i32, %c0_i32_0 : i32, i32
  }
  func.func @transform_2(%arg0: i32) -> (i32, i32) {
    %c0_i32 = arith.constant 0 : i32
    %c0_i32_0 = arith.constant 0 : i32
    %c0_i32_1 = arith.constant 0 : i32
    return %c0_i32, %c0_i32_0 : i32, i32
  }
  func.func @transform_3(%arg0: i32) -> (i32, i32) {
    %c0_i32 = arith.constant 0 : i32
    %c0_i32_0 = arith.constant 0 : i32
    %c0_i32_1 = arith.constant 0 : i32
    return %c0_i32, %c0_i32_0 : i32, i32
  }
}

</mosaic_0001>

<llo_original>
// kernel: mpr_model_forward.13
$region0: #{mpr_model_forward.13}
  #allocation0 [shape = 'u32[]', space=smem, size = 0x4, offset = 0x4, fixed_abs, tag = 'smem constant byte address 0x4 - core index']
  #allocation1 [shape = 'u32[144,128]{1,0:T(1,128)}', space=vmem, size = 0x12000, scoped, tag = 'internal scratch']
  #allocation2 [shape = 'f32[128,128]{1,0:T(8,128)}', space=vmem, size = 0x10000, scoped, tag = 'scratch operand']
  %s0 = inlined_call_operand.hbm [shape: bf16[128,128], index: 0, kind: input, shape index: {}]
  %s1 = inlined_call_operand.hbm [shape: bf16[128,128], index: 1, kind: input, shape index: {}]
  %s2 = inlined_call_operand.vmem [shape: f32[1,128], index: 2, kind: input, shape index: {}]
  %s3 = inlined_call_operand.vmem [shape: bf16[128,128], index: 3, kind: output, shape index: {}]
  %s4 = sld [smem:[#allocation0]]
  $region38: #{mpr_model_forward.13} parent=0
    _
  %s6 = ssub.s32 1, %s4
  %s7 = scalar_select 0, %s6, %s4
  $region1: #{mpr_model_forward.13} parent=0
    #allocation3 [shape = 'u8[32768]{0}', space=vmem, size = 0x8000, scoped, tag = 'input window, operand 0, single buffered']
    #allocation4 [shape = 's32[1]{0}', space=sflag, size = 0x4, scoped, tag = 'scoped memory for mpr_model_forward.13']
    #allocation5 [shape = 'u8[32768]{0}', space=vmem, size = 0x8000, scoped, tag = 'input window, operand 1, single buffered']
    #allocation6 [shape = 's32[1]{0}', space=sflag, size = 0x4, scoped, tag = 'scoped memory for mpr_model_forward.13']
    %8 = vsyncpa [#allocation4], 0
    %9 = vsyncpa [#allocation6], 0
    // Predicated region
    $region2: #{mpr_model_forward.13} parent=1 // pred_check
      _
    $region3: #{mpr_model_forward.13} parent=1 // pred_check_branch
      %11 = sbr.rel (0) target = $region5
    $region4: #{mpr_model_forward.13} parent=1 // pred_region
      %s13 = ssub.s32 1024, 1024
      %14 = vsyncadd [#allocation4], %s13
      %s15 = sshll.u32 [#allocation3], 4
      %s16 = int_to_ptr.vmem [resolvable:$true] %s15
      %21 = dma.hbm_to_vmem [thread:$0]  %s0, 1024, %s16, [#allocation4], 64, 64, 4
    $region5: #{mpr_model_forward.13} parent=1 // pred_fallthru
      _
    // Predicated region
    $region6: #{mpr_model_forward.13} parent=1 // pred_check
      _
    $region7: #{mpr_model_forward.13} parent=1 // pred_check_branch
      %23 = sbr.rel (0) target = $region9
    $region8: #{mpr_model_forward.13} parent=1 // pred_region
      %s25 = ssub.s32 1024, 1024
      %26 = vsyncadd [#allocation6], %s25
      %s27 = sshll.u32 [#allocation5], 4
      %s28 = int_to_ptr.vmem [resolvable:$true] %s27
      %33 = dma.hbm_to_vmem [thread:$0]  %s1, 1024, %s28, [#allocation6], 64, 64, 4
    $region9: #{mpr_model_forward.13} parent=1 // pred_fallthru
      _
    // Predicated region
    $region10: #{mpr_model_forward.13} parent=1 // pred_check
      _
    $region11: #{mpr_model_forward.13} parent=1 // pred_check_branch
      %35 = sbr.rel (0) target = $region13
    $region12: #{mpr_model_forward.13} parent=1 // pred_region
      _
    $region13: #{mpr_model_forward.13} parent=1 // pred_fallthru
      _
    // Predicated region
    $region14: #{mpr_model_forward.13} parent=1 // pred_check
      _
    $region15: #{mpr_model_forward.13} parent=1 // pred_check_branch
      %37 = sbr.rel (0) target = $region17
    $region16: #{mpr_model_forward.13} parent=1 // pred_region
      %38 = dma.done [#allocation4], 1024
    $region17: #{mpr_model_forward.13} parent=1 // pred_fallthru
      _
    // Predicated region
    $region18: #{mpr_model_forward.13} parent=1 // pred_check
      _
    $region19: #{mpr_model_forward.13} parent=1 // pred_check_branch
      %40 = sbr.rel (0) target = $region21
    $region20: #{mpr_model_forward.13} parent=1 // pred_region
      %41 = dma.done [#allocation6], 1024
    $region21: #{mpr_model_forward.13} parent=1 // pred_fallthru
      _
    %p43 = scmp.eq.s32.totalorder 0, 0
    // Predicated region
    $region22: #{mpr_model_forward.13} parent=1 // pred_check
      %p44 = pneg %p43
    $region23: #{mpr_model_forward.13} parent=1 // pred_check_branch
      %46 = sbr.rel (%p44) target = $region25
    $region24: #{mpr_model_forward.13} parent=1 // pred_region
      %47 = vst [vmem:[#allocation2] sm:$0xff] 0.0
      %48 = vst [vmem:[#allocation2 + $0x8] sm:$0xff] 0.0
      %49 = vst [vmem:[#allocation2 + $0x10] sm:$0xff] 0.0
      %50 = vst [vmem:[#allocation2 + $0x18] sm:$0xff] 0.0
      %51 = vst [vmem:[#allocation2 + $0x20] sm:$0xff] 0.0
      %52 = vst [vmem:[#allocation2 + $0x28] sm:$0xff] 0.0
      %53 = vst [vmem:[#allocation2 + $0x30] sm:$0xff] 0.0
      %54 = vst [vmem:[#allocation2 + $0x38] sm:$0xff] 0.0
      %55 = vst [vmem:[#allocation2 + $0x40] sm:$0xff] 0.0
      %56 = vst [vmem:[#allocation2 + $0x48] sm:$0xff] 0.0
      %57 = vst [vmem:[#allocation2 + $0x50] sm:$0xff] 0.0
      %58 = vst [vmem:[#allocation2 + $0x58] sm:$0xff] 0.0
      %59 = vst [vmem:[#allocation2 + $0x60] sm:$0xff] 0.0
      %60 = vst [vmem:[#allocation2 + $0x68] sm:$0xff] 0.0
      %61 = vst [vmem:[#allocation2 + $0x70] sm:$0xff] 0.0
      %62 = vst [vmem:[#allocation2 + $0x78] sm:$0xff] 0.0
    $region25: #{mpr_model_forward.13} parent=1 // pred_fallthru
      _
    %v63 = vld [vmem:[#allocation2] sm:$0xff]
    %v64 = vld [vmem:[#allocation2 + $0x8] sm:$0xff]
    %v65 = vld [vmem:[#allocation2 + $0x10] sm:$0xff]
    %v66 = vld [vmem:[#allocation2 + $0x18] sm:$0xff]
    %v67 = vld [vmem:[#allocation2 + $0x20] sm:$0xff]
    %v68 = vld [vmem:[#allocation2 + $0x28] sm:$0xff]
    %v69 = vld [vmem:[#allocation2 + $0x30] sm:$0xff]
    %v70 = vld [vmem:[#allocation2 + $0x38] sm:$0xff]
    %v71 = vld [vmem:[#allocation2 + $0x40] sm:$0xff]
    %v72 = vld [vmem:[#allocation2 + $0x48] sm:$0xff]
    %v73 = vld [vmem:[#allocation2 + $0x50] sm:$0xff]
    %v74 = vld [vmem:[#allocation2 + $0x58] sm:$0xff]
    %v75 = vld [vmem:[#allocation2 + $0x60] sm:$0xff]
    %v76 = vld [vmem:[#allocation2 + $0x68] sm:$0xff]
    %v77 = vld [vmem:[#allocation2 + $0x70] sm:$0xff]
    %v78 = vld [vmem:[#allocation2 + $0x78] sm:$0xff]
    %v79 = vld [vmem:[#allocation3] sm:$0xf]
    %v80 = vld [vmem:[#allocation3 + $0x4] sm:$0xf]
    %v81 = vld [vmem:[#allocation3 + $0x8] sm:$0xf]
    %v82 = vld [vmem:[#allocation3 + $0xc] sm:$0xf]
    %v83 = vld [vmem:[#allocation3 + $0x10] sm:$0xf]
    %v84 = vld [vmem:[#allocation3 + $0x14] sm:$0xf]
    %v85 = vld [vmem:[#allocation3 + $0x18] sm:$0xf]
    %v86 = vld [vmem:[#allocation3 + $0x1c] sm:$0xf]
    %v87 = vld [vmem:[#allocation3 + $0x20] sm:$0xf]
    %v88 = vld [vmem:[#allocation3 + $0x24] sm:$0xf]
    %v89 = vld [vmem:[#allocation3 + $0x28] sm:$0xf]
    %v90 = vld [vmem:[#allocation3 + $0x2c] sm:$0xf]
    %v91 = vld [vmem:[#allocation3 + $0x30] sm:$0xf]
    %v92 = vld [vmem:[#allocation3 + $0x34] sm:$0xf]
    %v93 = vld [vmem:[#allocation3 + $0x38] sm:$0xf]
    %v94 = vld [vmem:[#allocation3 + $0x3c] sm:$0xf]
    %v95 = vld [vmem:[#allocation5] sm:$0xf]
    %v96 = vld [vmem:[#allocation5 + $0x4] sm:$0xf]
    %v97 = vld [vmem:[#allocation5 + $0x8] sm:$0xf]
    %v98 = vld [vmem:[#allocation5 + $0xc] sm:$0xf]
    %v99 = vld [vmem:[#allocation5 + $0x10] sm:$0xf]
    %v100 = vld [vmem:[#allocation5 + $0x14] sm:$0xf]
    %v101 = vld [vmem:[#allocation5 + $0x18] sm:$0xf]
    %v102 = vld [vmem:[#allocation5 + $0x1c] sm:$0xf]
    %v103 = vld [vmem:[#allocation5 + $0x20] sm:$0xf]
    %v104 = vld [vmem:[#allocation5 + $0x24] sm:$0xf]
    %v105 = vld [vmem:[#allocation5 + $0x28] sm:$0xf]
    %v106 = vld [vmem:[#allocation5 + $0x2c] sm:$0xf]
    %v107 = vld [vmem:[#allocation5 + $0x30] sm:$0xf]
    %v108 = vld [vmem:[#allocation5 + $0x34] sm:$0xf]
    %v109 = vld [vmem:[#allocation5 + $0x38] sm:$0xf]
    %v110 = vld [vmem:[#allocation5 + $0x3c] sm:$0xf]
    %v127 = vunpack.c.l.b16 %v79
    %v128 = vunpack.c.l.b16 %v80
    %v129 = vunpack.c.l.b16 %v81
    %v130 = vunpack.c.l.b16 %v82
    %v131 = vunpack.c.l.b16 %v83
    %v132 = vunpack.c.l.b16 %v84
    %v133 = vunpack.c.l.b16 %v85
    %v134 = vunpack.c.l.b16 %v86
    %v135 = vunpack.c.l.b16 %v87
    %v136 = vunpack.c.l.b16 %v88
    %v137 = vunpack.c.l.b16 %v89
    %v138 = vunpack.c.l.b16 %v90
    %v139 = vunpack.c.l.b16 %v91
    %v140 = vunpack.c.l.b16 %v92
    %v141 = vunpack.c.l.b16 %v93
    %v142 = vunpack.c.l.b16 %v94
    %v143 = vpack.c.b16 %v128, %v127
    %v144 = vpack.c.b16 %v130, %v129
    %v145 = vpack.c.b16 %v132, %v131
    %v146 = vpack.c.b16 %v134, %v133
    %v147 = vpack.c.b16 %v136, %v135
    %v148 = vpack.c.b16 %v138, %v137
    %v149 = vpack.c.b16 %v140, %v139
    %v150 = vpack.c.b16 %v142, %v141
    %v175 = vunpack.c.l.b16 %v95
    %v176 = vunpack.c.l.b16 %v96
    %v177 = vunpack.c.l.b16 %v97
    %v178 = vunpack.c.l.b16 %v98
    %v179 = vunpack.c.l.b16 %v99
    %v180 = vunpack.c.l.b16 %v100
    %v181 = vunpack.c.l.b16 %v101
    %v182 = vunpack.c.l.b16 %v102
    %v183 = vunpack.c.l.b16 %v103
    %v184 = vunpack.c.l.b16 %v104
    %v185 = vunpack.c.l.b16 %v105
    %v186 = vunpack.c.l.b16 %v106
    %v187 = vunpack.c.l.b16 %v107
    %v188 = vunpack.c.l.b16 %v108
    %v189 = vunpack.c.l.b16 %v109
    %v190 = vunpack.c.l.b16 %v110
    %v191 = vpack.c.b16 %v176, %v175
    %v192 = vpack.c.b16 %v178, %v177
    %v193 = vpack.c.b16 %v180, %v179
    %v194 = vpack.c.b16 %v182, %v181
    %v195 = vpack.c.b16 %v184, %v183
    %v196 = vpack.c.b16 %v186, %v185
    %v197 = vpack.c.b16 %v188, %v187
    %v198 = vpack.c.b16 %v190, %v189
    %207 = vmatprep.subr.bf16.mxu0 0
    %208 = vmatpush1.bf16.msra.mxu0 %v191
    %209 = vmatprep.subr.bf16.mxu0 0
    %210 = vmatpush1.bf16.msra.mxu0 %v192
    %211 = vmatprep.subr.bf16.mxu0 0
    %212 = vmatpush1.bf16.msra.mxu0 %v193
    %213 = vmatprep.subr.bf16.mxu0 0
    %214 = vmatpush1.bf16.msra.mxu0 %v194
    %215 = vmatprep.subr.bf16.mxu0 0
    %216 = vmatpush1.bf16.msra.mxu0 %v195
    %217 = vmatprep.subr.bf16.mxu0 0
    %218 = vmatpush1.bf16.msra.mxu0 %v196
    %219 = vmatprep.subr.bf16.mxu0 0
    %220 = vmatpush1.bf16.msra.mxu0 %v197
    %221 = vmatprep.subr.bf16.mxu0 0
    %222 = vmatpush1.bf16.msra.mxu0 %v198
    %223 = vmatprep.subr.bf16.mxu0 0
    %224 = vmatpush1.bf16.msra.mxu0 0
    %225 = vmatprep.subr.bf16.mxu0 0
    %226 = vmatpush1.bf16.msra.mxu0 0
    %227 = vmatprep.subr.bf16.mxu0 0
    %228 = vmatpush1.bf16.msra.mxu0 0
    %229 = vmatprep.subr.bf16.mxu0 0
    %230 = vmatpush1.bf16.msra.mxu0 0
    %231 = vmatprep.subr.bf16.mxu0 0
    %232 = vmatpush1.bf16.msra.mxu0 0
    %233 = vmatprep.subr.bf16.mxu0 0
    %234 = vmatpush1.bf16.msra.mxu0 0
    %235 = vmatprep.subr.bf16.mxu0 0
    %236 = vmatpush1.bf16.msra.mxu0 0
    %237 = vmatprep.subr.bf16.mxu0 0
    %238 = vmatpush1.bf16.msra.mxu0 0
    %239 = vmatprep.mubr.bf16.mxu0 0
    %240 = vmatmul.mubr.bf16.gmra.mrb[0].mxu0 %v143
    %v241 = vpop.f32.mrb[0].mxu0
    %v242 = vadd.f32 0.0, %v241
    %v243 = vpop.f32.mrb[0].mxu0
    %v244 = vpop.f32.mrb[0].mxu0
    %v245 = vadd.f32 0.0, %v244
    %v246 = vpop.f32.mrb[0].mxu0
    %247 = vmatprep.mubr.bf16.mxu0 0
    %248 = vmatmul.mubr.bf16.gmra.mrb[0].mxu0 %v144
    %v249 = vpop.f32.mrb[0].mxu0
    %v250 = vadd.f32 0.0, %v249
    %v251 = vpop.f32.mrb[0].mxu0
    %v252 = vpop.f32.mrb[0].mxu0
    %v253 = vadd.f32 0.0, %v252
    %v254 = vpop.f32.mrb[0].mxu0
    %255 = vmatprep.mubr.bf16.mxu0 0
    %256 = vmatmul.mubr.bf16.gmra.mrb[0].mxu0 %v145
    %v257 = vpop.f32.mrb[0].mxu0
    %v258 = vadd.f32 0.0, %v257
    %v259 = vpop.f32.mrb[0].mxu0
    %v260 = vpop.f32.mrb[0].mxu0
    %v261 = vadd.f32 0.0, %v260
    %v262 = vpop.f32.mrb[0].mxu0
    %263 = vmatprep.mubr.bf16.mxu0 0
    %264 = vmatmul.mubr.bf16.gmra.mrb[0].mxu0 %v146
    %v265 = vpop.f32.mrb[0].mxu0
    %v266 = vadd.f32 0.0, %v265
    %v267 = vpop.f32.mrb[0].mxu0
    %v268 = vpop.f32.mrb[0].mxu0
    %v269 = vadd.f32 0.0, %v268
    %v270 = vpop.f32.mrb[0].mxu0
    %271 = vmatprep.mubr.bf16.mxu0 0
    %272 = vmatmul.mubr.bf16.gmra.mrb[0].mxu0 %v147
    %v273 = vpop.f32.mrb[0].mxu0
    %v274 = vadd.f32 0.0, %v273
    %v275 = vpop.f32.mrb[0].mxu0
    %v276 = vpop.f32.mrb[0].mxu0
    %v277 = vadd.f32 0.0, %v276
    %v278 = vpop.f32.mrb[0].mxu0
    %279 = vmatprep.mubr.bf16.mxu0 0
    %280 = vmatmul.mubr.bf16.gmra.mrb[0].mxu0 %v148
    %v281 = vpop.f32.mrb[0].mxu0
    %v282 = vadd.f32 0.0, %v281
    %v283 = vpop.f32.mrb[0].mxu0
    %v284 = vpop.f32.mrb[0].mxu0
    %v285 = vadd.f32 0.0, %v284
    %v286 = vpop.f32.mrb[0].mxu0
    %287 = vmatprep.mubr.bf16.mxu0 0
    %288 = vmatmul.mubr.bf16.gmra.mrb[0].mxu0 %v149
    %v289 = vpop.f32.mrb[0].mxu0
    %v290 = vadd.f32 0.0, %v289
    %v291 = vpop.f32.mrb[0].mxu0
    %v292 = vpop.f32.mrb[0].mxu0
    %v293 = vadd.f32 0.0, %v292
    %v294 = vpop.f32.mrb[0].mxu0
    %295 = vmatprep.mubr.bf16.mxu0 0
    %296 = vmatmul.mubr.bf16.gmra.mrb[0].mxu0 %v150
    %v297 = vpop.f32.mrb[0].mxu0
    %v298 = vadd.f32 0.0, %v297
    %v299 = vpop.f32.mrb[0].mxu0
    %v300 = vpop.f32.mrb[0].mxu0
    %v301 = vadd.f32 0.0, %v300
    %v302 = vpop.f32.mrb[0].mxu0
    %303 = vdwg.mxu0
    %v304 = vadd.f32 %v63, %v242
    %v305 = vadd.f32 %v64, %v245
    %v306 = vadd.f32 %v65, %v250
    %v307 = vadd.f32 %v66, %v253
    %v308 = vadd.f32 %v67, %v258
    %v309 = vadd.f32 %v68, %v261
    %v310 = vadd.f32 %v69, %v266
    %v311 = vadd.f32 %v70, %v269
    %v312 = vadd.f32 %v71, %v274
    %v313 = vadd.f32 %v72, %v277
    %v314 = vadd.f32 %v73, %v282
    %v315 = vadd.f32 %v74, %v285
    %v316 = vadd.f32 %v75, %v290
    %v317 = vadd.f32 %v76, %v293
    %v318 = vadd.f32 %v77, %v298
    %v319 = vadd.f32 %v78, %v301
    %320 = vst [vmem:[#allocation2] sm:$0xff] %v304
    %321 = vst [vmem:[#allocation2 + $0x8] sm:$0xff] %v305
    %322 = vst [vmem:[#allocation2 + $0x10] sm:$0xff] %v306
    %323 = vst [vmem:[#allocation2 + $0x18] sm:$0xff] %v307
    %324 = vst [vmem:[#allocation2 + $0x20] sm:$0xff] %v308
    %325 = vst [vmem:[#allocation2 + $0x28] sm:$0xff] %v309
    %326 = vst [vmem:[#allocation2 + $0x30] sm:$0xff] %v310
    %327 = vst [vmem:[#allocation2 + $0x38] sm:$0xff] %v311
    %328 = vst [vmem:[#allocation2 + $0x40] sm:$0xff] %v312
    %329 = vst [vmem:[#allocation2 + $0x48] sm:$0xff] %v313
    %330 = vst [vmem:[#allocation2 + $0x50] sm:$0xff] %v314
    %331 = vst [vmem:[#allocation2 + $0x58] sm:$0xff] %v315
    %332 = vst [vmem:[#allocation2 + $0x60] sm:$0xff] %v316
    %333 = vst [vmem:[#allocation2 + $0x68] sm:$0xff] %v317
    %334 = vst [vmem:[#allocation2 + $0x70] sm:$0xff] %v318
    %335 = vst [vmem:[#allocation2 + $0x78] sm:$0xff] %v319
    // Predicated region
    $region26: #{mpr_model_forward.13} parent=1 // pred_check
      %p336 = pneg %p43
    $region27: #{mpr_model_forward.13} parent=1 // pred_check_branch
      %338 = sbr.rel (%p336) target = $region29
    $region28: #{mpr_model_forward.13} parent=1 // pred_region
      %v339 = vld [vmem:[#allocation2] sm:$0xff]
      %v340 = vld [vmem:[#allocation2 + $0x8] sm:$0xff]
      %v341 = vld [vmem:[#allocation2 + $0x10] sm:$0xff]
      %v342 = vld [vmem:[#allocation2 + $0x18] sm:$0xff]
      %v343 = vld [vmem:[#allocation2 + $0x20] sm:$0xff]
      %v344 = vld [vmem:[#allocation2 + $0x28] sm:$0xff]
      %v345 = vld [vmem:[#allocation2 + $0x30] sm:$0xff]
      %v346 = vld [vmem:[#allocation2 + $0x38] sm:$0xff]
      %v347 = vld [vmem:[#allocation2 + $0x40] sm:$0xff]
      %v348 = vld [vmem:[#allocation2 + $0x48] sm:$0xff]
      %v349 = vld [vmem:[#allocation2 + $0x50] sm:$0xff]
      %v350 = vld [vmem:[#allocation2 + $0x58] sm:$0xff]
      %v351 = vld [vmem:[#allocation2 + $0x60] sm:$0xff]
      %v352 = vld [vmem:[#allocation2 + $0x68] sm:$0xff]
      %v353 = vld [vmem:[#allocation2 + $0x70] sm:$0xff]
      %v354 = vld [vmem:[#allocation2 + $0x78] sm:$0xff]
      %v355 = vld [vmem:[%s2] sm:$0x1]
      %v357 = vlaneseq
      %v358 = vshrl.u32 %v357, 7
      %v359 = vsub.s32 0, %v358
      %v360 = vrot.slane %v355, %v359
      %v362 = vadd.f32 %v339, %v360
      %v363 = vadd.f32 %v340, %v360
      %v364 = vadd.f32 %v341, %v360
      %v365 = vadd.f32 %v342, %v360
      %v366 = vadd.f32 %v343, %v360
      %v367 = vadd.f32 %v344, %v360
      %v368 = vadd.f32 %v345, %v360
      %v369 = vadd.f32 %v346, %v360
      %v370 = vadd.f32 %v347, %v360
      %v371 = vadd.f32 %v348, %v360
      %v372 = vadd.f32 %v349, %v360
      %v373 = vadd.f32 %v350, %v360
      %v374 = vadd.f32 %v351, %v360
      %v375 = vadd.f32 %v352, %v360
      %v376 = vadd.f32 %v353, %v360
      %v377 = vadd.f32 %v354, %v360
      %v378 = vpack.c.bf16 %v363, %v362
      %v379 = vpack.c.bf16 %v365, %v364
      %v380 = vpack.c.bf16 %v367, %v366
      %v381 = vpack.c.bf16 %v369, %v368
      %v382 = vpack.c.bf16 %v371, %v370
      %v383 = vpack.c.bf16 %v373, %v372
      %v384 = vpack.c.bf16 %v375, %v374
      %v385 = vpack.c.bf16 %v377, %v376
      %v394 = vunpack.c.l.b16 %v378
      %v395 = vunpack.c.h.b16 %v378
      %v396 = vunpack.c.l.b16 %v379
      %v397 = vunpack.c.h.b16 %v379
      %v398 = vunpack.c.l.b16 %v380
      %v399 = vunpack.c.h.b16 %v380
      %v400 = vunpack.c.l.b16 %v381
      %v401 = vunpack.c.h.b16 %v381
      %v402 = vunpack.c.l.b16 %v382
      %v403 = vunpack.c.h.b16 %v382
      %v404 = vunpack.c.l.b16 %v383
      %v405 = vunpack.c.h.b16 %v383
      %v406 = vunpack.c.l.b16 %v384
      %v407 = vunpack.c.h.b16 %v384
      %v408 = vunpack.c.l.b16 %v385
      %v409 = vunpack.c.h.b16 %v385
      %v410 = vpack.c.b16 %v394, %v394
      %v411 = vpack.c.b16 %v395, %v395
      %v412 = vpack.c.b16 %v396, %v396
      %v413 = vpack.c.b16 %v397, %v397
      %v414 = vpack.c.b16 %v398, %v398
      %v415 = vpack.c.b16 %v399, %v399
      %v416 = vpack.c.b16 %v400, %v400
      %v417 = vpack.c.b16 %v401, %v401
      %v418 = vpack.c.b16 %v402, %v402
      %v419 = vpack.c.b16 %v403, %v403
      %v420 = vpack.c.b16 %v404, %v404
      %v421 = vpack.c.b16 %v405, %v405
      %v422 = vpack.c.b16 %v406, %v406
      %v423 = vpack.c.b16 %v407, %v407
      %v424 = vpack.c.b16 %v408, %v408
      %v425 = vpack.c.b16 %v409, %v409
      %442 = vst [vmem:[%s3] sm:$0xf] %v410
      %443 = vst [vmem:[%s3 + $0x4] sm:$0xf] %v411
      %444 = vst [vmem:[%s3 + $0x8] sm:$0xf] %v412
      %445 = vst [vmem:[%s3 + $0xc] sm:$0xf] %v413
      %446 = vst [vmem:[%s3 + $0x10] sm:$0xf] %v414
      %447 = vst [vmem:[%s3 + $0x14] sm:$0xf] %v415
      %448 = vst [vmem:[%s3 + $0x18] sm:$0xf] %v416
      %449 = vst [vmem:[%s3 + $0x1c] sm:$0xf] %v417
      %450 = vst [vmem:[%s3 + $0x20] sm:$0xf] %v418
      %451 = vst [vmem:[%s3 + $0x24] sm:$0xf] %v419
      %452 = vst [vmem:[%s3 + $0x28] sm:$0xf] %v420
      %453 = vst [vmem:[%s3 + $0x2c] sm:$0xf] %v421
      %454 = vst [vmem:[%s3 + $0x30] sm:$0xf] %v422
      %455 = vst [vmem:[%s3 + $0x34] sm:$0xf] %v423
      %456 = vst [vmem:[%s3 + $0x38] sm:$0xf] %v424
      %457 = vst [vmem:[%s3 + $0x3c] sm:$0xf] %v425
    $region29: #{mpr_model_forward.13} parent=1 // pred_fallthru
      _
    // Predicated region
    $region30: #{mpr_model_forward.13} parent=1 // pred_check
      _
    $region31: #{mpr_model_forward.13} parent=1 // pred_check_branch
      %459 = sbr.rel (0) target = $region33
    $region32: #{mpr_model_forward.13} parent=1 // pred_region
      _
    $region33: #{mpr_model_forward.13} parent=1 // pred_fallthru
      _
    // Predicated region
    $region34: #{mpr_model_forward.13} parent=1 // pred_check
      _
    $region35: #{mpr_model_forward.13} parent=1 // pred_check_branch
      %461 = sbr.rel (0) target = $region37
    $region36: #{mpr_model_forward.13} parent=1 // pred_region
      _
    $region37: #{mpr_model_forward.13} parent=1 // pred_fallthru
      _
    %462 = vsyncpa [#allocation4], 1
    %463 = vsyncpa [#allocation6], 1

// kernel: mpr_model_forward.14
$region0: #{mpr_model_forward.14}
  #allocation0 [shape = 'u32[]', space=smem, size = 0x4, offset = 0x4, fixed_abs, tag = 'smem constant byte address 0x4 - core index']
  #allocation1 [shape = 'u32[144,128]{1,0:T(1,128)}', space=vmem, size = 0x12000, scoped, tag = 'internal scratch']
  #allocation2 [shape = 'f32[128,128]{1,0:T(8,128)}', space=vmem, size = 0x10000, scoped, tag = 'scratch operand']
  %s0 = inlined_call_operand.vmem [shape: bf16[128,128], index: 0, kind: input, shape index: {}]
  %s1 = inlined_call_operand.vmem [shape: bf16[128,128], index: 1, kind: input, shape index: {}]
  %s2 = inlined_call_operand.vmem [shape: f32[1,128], index: 2, kind: input, shape index: {}]
  %s3 = inlined_call_operand.vmem [shape: bf16[128,128], index: 3, kind: output, shape index: {}]
  %s4 = sld [smem:[#allocation0]]
  $region30: #{mpr_model_forward.14} parent=0
    _
  %s6 = ssub.s32 1, %s4
  %s7 = scalar_select 0, %s6, %s4
  // Predicated region
  $region2: #{mpr_model_forward.14} parent=0 // pred_check
    _
  $region3: #{mpr_model_forward.14} parent=0 // pred_check_branch
    %9 = sbr.rel (0) target = $region5
  $region4: #{mpr_model_forward.14} parent=0 // pred_region
    _
  $region5: #{mpr_model_forward.14} parent=0 // pred_fallthru
    _
  // Predicated region
  $region6: #{mpr_model_forward.14} parent=0 // pred_check
    _
  $region7: #{mpr_model_forward.14} parent=0 // pred_check_branch
    %11 = sbr.rel (0) target = $region9
  $region8: #{mpr_model_forward.14} parent=0 // pred_region
    _
  $region9: #{mpr_model_forward.14} parent=0 // pred_fallthru
    _
  // Predicated region
  $region10: #{mpr_model_forward.14} parent=0 // pred_check
    _
  $region11: #{mpr_model_forward.14} parent=0 // pred_check_branch
    %13 = sbr.rel (0) target = $region13
  $region12: #{mpr_model_forward.14} parent=0 // pred_region
    _
  $region13: #{mpr_model_forward.14} parent=0 // pred_fallthru
    _
  %p15 = scmp.eq.s32.totalorder 0, 0
  // Predicated region
  $region14: #{mpr_model_forward.14} parent=0 // pred_check
    %p16 = pneg %p15
  $region15: #{mpr_model_forward.14} parent=0 // pred_check_branch
    %18 = sbr.rel (%p16) target = $region17
  $region16: #{mpr_model_forward.14} parent=0 // pred_region
    %19 = vst [vmem:[#allocation2] sm:$0xff] 0.0
    %20 = vst [vmem:[#allocation2 + $0x8] sm:$0xff] 0.0
    %21 = vst [vmem:[#allocation2 + $0x10] sm:$0xff] 0.0
    %22 = vst [vmem:[#allocation2 + $0x18] sm:$0xff] 0.0
    %23 = vst [vmem:[#allocation2 + $0x20] sm:$0xff] 0.0
    %24 = vst [vmem:[#allocation2 + $0x28] sm:$0xff] 0.0
    %25 = vst [vmem:[#allocation2 + $0x30] sm:$0xff] 0.0
    %26 = vst [vmem:[#allocation2 + $0x38] sm:$0xff] 0.0
    %27 = vst [vmem:[#allocation2 + $0x40] sm:$0xff] 0.0
    %28 = vst [vmem:[#allocation2 + $0x48] sm:$0xff] 0.0
    %29 = vst [vmem:[#allocation2 + $0x50] sm:$0xff] 0.0
    %30 = vst [vmem:[#allocation2 + $0x58] sm:$0xff] 0.0
    %31 = vst [vmem:[#allocation2 + $0x60] sm:$0xff] 0.0
    %32 = vst [vmem:[#allocation2 + $0x68] sm:$0xff] 0.0
    %33 = vst [vmem:[#allocation2 + $0x70] sm:$0xff] 0.0
    %34 = vst [vmem:[#allocation2 + $0x78] sm:$0xff] 0.0
  $region17: #{mpr_model_forward.14} parent=0 // pred_fallthru
    _
  %v35 = vld [vmem:[#allocation2] sm:$0xff]
  %v36 = vld [vmem:[#allocation2 + $0x8] sm:$0xff]
  %v37 = vld [vmem:[#allocation2 + $0x10] sm:$0xff]
  %v38 = vld [vmem:[#allocation2 + $0x18] sm:$0xff]
  %v39 = vld [vmem:[#allocation2 + $0x20] sm:$0xff]
  %v40 = vld [vmem:[#allocation2 + $0x28] sm:$0xff]
  %v41 = vld [vmem:[#allocation2 + $0x30] sm:$0xff]
  %v42 = vld [vmem:[#allocation2 + $0x38] sm:$0xff]
  %v43 = vld [vmem:[#allocation2 + $0x40] sm:$0xff]
  %v44 = vld [vmem:[#allocation2 + $0x48] sm:$0xff]
  %v45 = vld [vmem:[#allocation2 + $0x50] sm:$0xff]
  %v46 = vld [vmem:[#allocation2 + $0x58] sm:$0xff]
  %v47 = vld [vmem:[#allocation2 + $0x60] sm:$0xff]
  %v48 = vld [vmem:[#allocation2 + $0x68] sm:$0xff]
  %v49 = vld [vmem:[#allocation2 + $0x70] sm:$0xff]
  %v50 = vld [vmem:[#allocation2 + $0x78] sm:$0xff]
  %v51 = vld [vmem:[%s0] sm:$0xf]
  %v52 = vld [vmem:[%s0 + $0x4] sm:$0xf]
  %v53 = vld [vmem:[%s0 + $0x8] sm:$0xf]
  %v54 = vld [vmem:[%s0 + $0xc] sm:$0xf]
  %v55 = vld [vmem:[%s0 + $0x10] sm:$0xf]
  %v56 = vld [vmem:[%s0 + $0x14] sm:$0xf]
  %v57 = vld [vmem:[%s0 + $0x18] sm:$0xf]
  %v58 = vld [vmem:[%s0 + $0x1c] sm:$0xf]
  %v59 = vld [vmem:[%s0 + $0x20] sm:$0xf]
  %v60 = vld [vmem:[%s0 + $0x24] sm:$0xf]
  %v61 = vld [vmem:[%s0 + $0x28] sm:$0xf]
  %v62 = vld [vmem:[%s0 + $0x2c] sm:$0xf]
  %v63 = vld [vmem:[%s0 + $0x30] sm:$0xf]
  %v64 = vld [vmem:[%s0 + $0x34] sm:$0xf]
  %v65 = vld [vmem:[%s0 + $0x38] sm:$0xf]
  %v66 = vld [vmem:[%s0 + $0x3c] sm:$0xf]
  %v67 = vld [vmem:[%s1] sm:$0xf]
  %v68 = vld [vmem:[%s1 + $0x4] sm:$0xf]
  %v69 = vld [vmem:[%s1 + $0x8] sm:$0xf]
  %v70 = vld [vmem:[%s1 + $0xc] sm:$0xf]
  %v71 = vld [vmem:[%s1 + $0x10] sm:$0xf]
  %v72 = vld [vmem:[%s1 + $0x14] sm:$0xf]
  %v73 = vld [vmem:[%s1 + $0x18] sm:$0xf]
  %v74 = vld [vmem:[%s1 + $0x1c] sm:$0xf]
  %v75 = vld [vmem:[%s1 + $0x20] sm:$0xf]
  %v76 = vld [vmem:[%s1 + $0x24] sm:$0xf]
  %v77 = vld [vmem:[%s1 + $0x28] sm:$0xf]
  %v78 = vld [vmem:[%s1 + $0x2c] sm:$0xf]
  %v79 = vld [vmem:[%s1 + $0x30] sm:$0xf]
  %v80 = vld [vmem:[%s1 + $0x34] sm:$0xf]
  %v81 = vld [vmem:[%s1 + $0x38] sm:$0xf]
  %v82 = vld [vmem:[%s1 + $0x3c] sm:$0xf]
  %v99 = vunpack.c.l.b16 %v51
  %v100 = vunpack.c.l.b16 %v52
  %v101 = vunpack.c.l.b16 %v53
  %v102 = vunpack.c.l.b16 %v54
  %v103 = vunpack.c.l.b16 %v55
  %v104 = vunpack.c.l.b16 %v56
  %v105 = vunpack.c.l.b16 %v57
  %v106 = vunpack.c.l.b16 %v58
  %v107 = vunpack.c.l.b16 %v59
  %v108 = vunpack.c.l.b16 %v60
  %v109 = vunpack.c.l.b16 %v61
  %v110 = vunpack.c.l.b16 %v62
  %v111 = vunpack.c.l.b16 %v63
  %v112 = vunpack.c.l.b16 %v64
  %v113 = vunpack.c.l.b16 %v65
  %v114 = vunpack.c.l.b16 %v66
  %v115 = vpack.c.b16 %v100, %v99
  %v116 = vpack.c.b16 %v102, %v101
  %v117 = vpack.c.b16 %v104, %v103
  %v118 = vpack.c.b16 %v106, %v105
  %v119 = vpack.c.b16 %v108, %v107
  %v120 = vpack.c.b16 %v110, %v109
  %v121 = vpack.c.b16 %v112, %v111
  %v122 = vpack.c.b16 %v114, %v113
  %v147 = vunpack.c.l.b16 %v67
  %v148 = vunpack.c.l.b16 %v68
  %v149 = vunpack.c.l.b16 %v69
  %v150 = vunpack.c.l.b16 %v70
  %v151 = vunpack.c.l.b16 %v71
  %v152 = vunpack.c.l.b16 %v72
  %v153 = vunpack.c.l.b16 %v73
  %v154 = vunpack.c.l.b16 %v74
  %v155 = vunpack.c.l.b16 %v75
  %v156 = vunpack.c.l.b16 %v76
  %v157 = vunpack.c.l.b16 %v77
  %v158 = vunpack.c.l.b16 %v78
  %v159 = vunpack.c.l.b16 %v79
  %v160 = vunpack.c.l.b16 %v80
  %v161 = vunpack.c.l.b16 %v81
  %v162 = vunpack.c.l.b16 %v82
  %v163 = vpack.c.b16 %v148, %v147
  %v164 = vpack.c.b16 %v150, %v149
  %v165 = vpack.c.b16 %v152, %v151
  %v166 = vpack.c.b16 %v154, %v153
  %v167 = vpack.c.b16 %v156, %v155
  %v168 = vpack.c.b16 %v158, %v157
  %v169 = vpack.c.b16 %v160, %v159
  %v170 = vpack.c.b16 %v162, %v161
  %179 = vmatprep.subr.bf16.mxu0 0
  %180 = vmatpush1.bf16.msra.mxu0 %v163
  %181 = vmatprep.subr.bf16.mxu0 0
  %182 = vmatpush1.bf16.msra.mxu0 %v164
  %183 = vmatprep.subr.bf16.mxu0 0
  %184 = vmatpush1.bf16.msra.mxu0 %v165
  %185 = vmatprep.subr.bf16.mxu0 0
  %186 = vmatpush1.bf16.msra.mxu0 %v166
  %187 = vmatprep.subr.bf16.mxu0 0
  %188 = vmatpush1.bf16.msra.mxu0 %v167
  %189 = vmatprep.subr.bf16.mxu0 0
  %190 = vmatpush1.bf16.msra.mxu0 %v168
  %191 = vmatprep.subr.bf16.mxu0 0
  %192 = vmatpush1.bf16.msra.mxu0 %v169
  %193 = vmatprep.subr.bf16.mxu0 0
  %194 = vmatpush1.bf16.msra.mxu0 %v170
  %195 = vmatprep.subr.bf16.mxu0 0
  %196 = vmatpush1.bf16.msra.mxu0 0
  %197 = vmatprep.subr.bf16.mxu0 0
  %198 = vmatpush1.bf16.msra.mxu0 0
  %199 = vmatprep.subr.bf16.mxu0 0
  %200 = vmatpush1.bf16.msra.mxu0 0
  %201 = vmatprep.subr.bf16.mxu0 0
  %202 = vmatpush1.bf16.msra.mxu0 0
  %203 = vmatprep.subr.bf16.mxu0 0
  %204 = vmatpush1.bf16.msra.mxu0 0
  %205 = vmatprep.subr.bf16.mxu0 0
  %206 = vmatpush1.bf16.msra.mxu0 0
  %207 = vmatprep.subr.bf16.mxu0 0
  %208 = vmatpush1.bf16.msra.mxu0 0
  %209 = vmatprep.subr.bf16.mxu0 0
  %210 = vmatpush1.bf16.msra.mxu0 0
  %211 = vmatprep.mubr.bf16.mxu0 0
  %212 = vmatmul.mubr.bf16.gmra.mrb[0].mxu0 %v115
  %v213 = vpop.f32.mrb[0].mxu0
  %v214 = vadd.f32 0.0, %v213
  %v215 = vpop.f32.mrb[0].mxu0
  %v216 = vpop.f32.mrb[0].mxu0
  %v217 = vadd.f32 0.0, %v216
  %v218 = vpop.f32.mrb[0].mxu0
  %219 = vmatprep.mubr.bf16.mxu0 0
  %220 = vmatmul.mubr.bf16.gmra.mrb[0].mxu0 %v116
  %v221 = vpop.f32.mrb[0].mxu0
  %v222 = vadd.f32 0.0, %v221
  %v223 = vpop.f32.mrb[0].mxu0
  %v224 = vpop.f32.mrb[0].mxu0
  %v225 = vadd.f32 0.0, %v224
  %v226 = vpop.f32.mrb[0].mxu0
  %227 = vmatprep.mubr.bf16.mxu0 0
  %228 = vmatmul.mubr.bf16.gmra.mrb[0].mxu0 %v117
  %v229 = vpop.f32.mrb[0].mxu0
  %v230 = vadd.f32 0.0, %v229
  %v231 = vpop.f32.mrb[0].mxu0
  %v232 = vpop.f32.mrb[0].mxu0
  %v233 = vadd.f32 0.0, %v232
  %v234 = vpop.f32.mrb[0].mxu0
  %235 = vmatprep.mubr.bf16.mxu0 0
  %236 = vmatmul.mubr.bf16.gmra.mrb[0].mxu0 %v118
  %v237 = vpop.f32.mrb[0].mxu0
  %v238 = vadd.f32 0.0, %v237
  %v239 = vpop.f32.mrb[0].mxu0
  %v240 = vpop.f32.mrb[0].mxu0
  %v241 = vadd.f32 0.0, %v240
  %v242 = vpop.f32.mrb[0].mxu0
  %243 = vmatprep.mubr.bf16.mxu0 0
  %244 = vmatmul.mubr.bf16.gmra.mrb[0].mxu0 %v119
  %v245 = vpop.f32.mrb[0].mxu0
  %v246 = vadd.f32 0.0, %v245
  %v247 = vpop.f32.mrb[0].mxu0
  %v248 = vpop.f32.mrb[0].mxu0
  %v249 = vadd.f32 0.0, %v248
  %v250 = vpop.f32.mrb[0].mxu0
  %251 = vmatprep.mubr.bf16.mxu0 0
  %252 = vmatmul.mubr.bf16.gmra.mrb[0].mxu0 %v120
  %v253 = vpop.f32.mrb[0].mxu0
  %v254 = vadd.f32 0.0, %v253
  %v255 = vpop.f32.mrb[0].mxu0
  %v256 = vpop.f32.mrb[0].mxu0
  %v257 = vadd.f32 0.0, %v256
  %v258 = vpop.f32.mrb[0].mxu0
  %259 = vmatprep.mubr.bf16.mxu0 0
  %260 = vmatmul.mubr.bf16.gmra.mrb[0].mxu0 %v121
  %v261 = vpop.f32.mrb[0].mxu0
  %v262 = vadd.f32 0.0, %v261
  %v263 = vpop.f32.mrb[0].mxu0
  %v264 = vpop.f32.mrb[0].mxu0
  %v265 = vadd.f32 0.0, %v264
  %v266 = vpop.f32.mrb[0].mxu0
  %267 = vmatprep.mubr.bf16.mxu0 0
  %268 = vmatmul.mubr.bf16.gmra.mrb[0].mxu0 %v122
  %v269 = vpop.f32.mrb[0].mxu0
  %v270 = vadd.f32 0.0, %v269
  %v271 = vpop.f32.mrb[0].mxu0
  %v272 = vpop.f32.mrb[0].mxu0
  %v273 = vadd.f32 0.0, %v272
  %v274 = vpop.f32.mrb[0].mxu0
  %275 = vdwg.mxu0
  %v276 = vadd.f32 %v35, %v214
  %v277 = vadd.f32 %v36, %v217
  %v278 = vadd.f32 %v37, %v222
  %v279 = vadd.f32 %v38, %v225
  %v280 = vadd.f32 %v39, %v230
  %v281 = vadd.f32 %v40, %v233
  %v282 = vadd.f32 %v41, %v238
  %v283 = vadd.f32 %v42, %v241
  %v284 = vadd.f32 %v43, %v246
  %v285 = vadd.f32 %v44, %v249
  %v286 = vadd.f32 %v45, %v254
  %v287 = vadd.f32 %v46, %v257
  %v288 = vadd.f32 %v47, %v262
  %v289 = vadd.f32 %v48, %v265
  %v290 = vadd.f32 %v49, %v270
  %v291 = vadd.f32 %v50, %v273
  %292 = vst [vmem:[#allocation2] sm:$0xff] %v276
  %293 = vst [vmem:[#allocation2 + $0x8] sm:$0xff] %v277
  %294 = vst [vmem:[#allocation2 + $0x10] sm:$0xff] %v278
  %295 = vst [vmem:[#allocation2 + $0x18] sm:$0xff] %v279
  %296 = vst [vmem:[#allocation2 + $0x20] sm:$0xff] %v280
  %297 = vst [vmem:[#allocation2 + $0x28] sm:$0xff] %v281
  %298 = vst [vmem:[#allocation2 + $0x30] sm:$0xff] %v282
  %299 = vst [vmem:[#allocation2 + $0x38] sm:$0xff] %v283
  %300 = vst [vmem:[#allocation2 + $0x40] sm:$0xff] %v284
  %301 = vst [vmem:[#allocation2 + $0x48] sm:$0xff] %v285
  %302 = vst [vmem:[#allocation2 + $0x50] sm:$0xff] %v286
  %303 = vst [vmem:[#allocation2 + $0x58] sm:$0xff] %v287
  %304 = vst [vmem:[#allocation2 + $0x60] sm:$0xff] %v288
  %305 = vst [vmem:[#allocation2 + $0x68] sm:$0xff] %v289
  %306 = vst [vmem:[#allocation2 + $0x70] sm:$0xff] %v290
  %307 = vst [vmem:[#allocation2 + $0x78] sm:$0xff] %v291
  // Predicated region
  $region18: #{mpr_model_forward.14} parent=0 // pred_check
    %p308 = pneg %p15
  $region19: #{mpr_model_forward.14} parent=0 // pred_check_branch
    %310 = sbr.rel (%p308) target = $region21
  $region20: #{mpr_model_forward.14} parent=0 // pred_region
    %v311 = vld [vmem:[#allocation2] sm:$0xff]
    %v312 = vld [vmem:[#allocation2 + $0x8] sm:$0xff]
    %v313 = vld [vmem:[#allocation2 + $0x10] sm:$0xff]
    %v314 = vld [vmem:[#allocation2 + $0x18] sm:$0xff]
    %v315 = vld [vmem:[#allocation2 + $0x20] sm:$0xff]
    %v316 = vld [vmem:[#allocation2 + $0x28] sm:$0xff]
    %v317 = vld [vmem:[#allocation2 + $0x30] sm:$0xff]
    %v318 = vld [vmem:[#allocation2 + $0x38] sm:$0xff]
    %v319 = vld [vmem:[#allocation2 + $0x40] sm:$0xff]
    %v320 = vld [vmem:[#allocation2 + $0x48] sm:$0xff]
    %v321 = vld [vmem:[#allocation2 + $0x50] sm:$0xff]
    %v322 = vld [vmem:[#allocation2 + $0x58] sm:$0xff]
    %v323 = vld [vmem:[#allocation2 + $0x60] sm:$0xff]
    %v324 = vld [vmem:[#allocation2 + $0x68] sm:$0xff]
    %v325 = vld [vmem:[#allocation2 + $0x70] sm:$0xff]
    %v326 = vld [vmem:[#allocation2 + $0x78] sm:$0xff]
    %v327 = vld [vmem:[%s2] sm:$0x1]
    %v329 = vlaneseq
    %v330 = vshrl.u32 %v329, 7
    %v331 = vsub.s32 0, %v330
    %v332 = vrot.slane %v327, %v331
    %v334 = vadd.f32 %v311, %v332
    %v335 = vadd.f32 %v312, %v332
    %v336 = vadd.f32 %v313, %v332
    %v337 = vadd.f32 %v314, %v332
    %v338 = vadd.f32 %v315, %v332
    %v339 = vadd.f32 %v316, %v332
    %v340 = vadd.f32 %v317, %v332
    %v341 = vadd.f32 %v318, %v332
    %v342 = vadd.f32 %v319, %v332
    %v343 = vadd.f32 %v320, %v332
    %v344 = vadd.f32 %v321, %v332
    %v345 = vadd.f32 %v322, %v332
    %v346 = vadd.f32 %v323, %v332
    %v347 = vadd.f32 %v324, %v332
    %v348 = vadd.f32 %v325, %v332
    %v349 = vadd.f32 %v326, %v332
    %v350 = vmax.f32 %v334, 0.0
    %v351 = vmax.f32 %v335, 0.0
    %v352 = vmax.f32 %v336, 0.0
    %v353 = vmax.f32 %v337, 0.0
    %v354 = vmax.f32 %v338, 0.0
    %v355 = vmax.f32 %v339, 0.0
    %v356 = vmax.f32 %v340, 0.0
    %v357 = vmax.f32 %v341, 0.0
    %v358 = vmax.f32 %v342, 0.0
    %v359 = vmax.f32 %v343, 0.0
    %v360 = vmax.f32 %v344, 0.0
    %v361 = vmax.f32 %v345, 0.0
    %v362 = vmax.f32 %v346, 0.0
    %v363 = vmax.f32 %v347, 0.0
    %v364 = vmax.f32 %v348, 0.0
    %v365 = vmax.f32 %v349, 0.0
    %v366 = vpack.c.bf16 %v351, %v350
    %v367 = vpack.c.bf16 %v353, %v352
    %v368 = vpack.c.bf16 %v355, %v354
    %v369 = vpack.c.bf16 %v357, %v356
    %v370 = vpack.c.bf16 %v359, %v358
    %v371 = vpack.c.bf16 %v361, %v360
    %v372 = vpack.c.bf16 %v363, %v362
    %v373 = vpack.c.bf16 %v365, %v364
    %v382 = vunpack.c.l.b16 %v366
    %v383 = vunpack.c.h.b16 %v366
    %v384 = vunpack.c.l.b16 %v367
    %v385 = vunpack.c.h.b16 %v367
    %v386 = vunpack.c.l.b16 %v368
    %v387 = vunpack.c.h.b16 %v368
    %v388 = vunpack.c.l.b16 %v369
    %v389 = vunpack.c.h.b16 %v369
    %v390 = vunpack.c.l.b16 %v370
    %v391 = vunpack.c.h.b16 %v370
    %v392 = vunpack.c.l.b16 %v371
    %v393 = vunpack.c.h.b16 %v371
    %v394 = vunpack.c.l.b16 %v372
    %v395 = vunpack.c.h.b16 %v372
    %v396 = vunpack.c.l.b16 %v373
    %v397 = vunpack.c.h.b16 %v373
    %v398 = vpack.c.b16 %v382, %v382
    %v399 = vpack.c.b16 %v383, %v383
    %v400 = vpack.c.b16 %v384, %v384
    %v401 = vpack.c.b16 %v385, %v385
    %v402 = vpack.c.b16 %v386, %v386
    %v403 = vpack.c.b16 %v387, %v387
    %v404 = vpack.c.b16 %v388, %v388
    %v405 = vpack.c.b16 %v389, %v389
    %v406 = vpack.c.b16 %v390, %v390
    %v407 = vpack.c.b16 %v391, %v391
    %v408 = vpack.c.b16 %v392, %v392
    %v409 = vpack.c.b16 %v393, %v393
    %v410 = vpack.c.b16 %v394, %v394
    %v411 = vpack.c.b16 %v395, %v395
    %v412 = vpack.c.b16 %v396, %v396
    %v413 = vpack.c.b16 %v397, %v397
    %430 = vst [vmem:[%s3] sm:$0xf] %v398
    %431 = vst [vmem:[%s3 + $0x4] sm:$0xf] %v399
    %432 = vst [vmem:[%s3 + $0x8] sm:$0xf] %v400
    %433 = vst [vmem:[%s3 + $0xc] sm:$0xf] %v401
    %434 = vst [vmem:[%s3 + $0x10] sm:$0xf] %v402
    %435 = vst [vmem:[%s3 + $0x14] sm:$0xf] %v403
    %436 = vst [vmem:[%s3 + $0x18] sm:$0xf] %v404
    %437 = vst [vmem:[%s3 + $0x1c] sm:$0xf] %v405
    %438 = vst [vmem:[%s3 + $0x20] sm:$0xf] %v406
    %439 = vst [vmem:[%s3 + $0x24] sm:$0xf] %v407
    %440 = vst [vmem:[%s3 + $0x28] sm:$0xf] %v408
    %441 = vst [vmem:[%s3 + $0x2c] sm:$0xf] %v409
    %442 = vst [vmem:[%s3 + $0x30] sm:$0xf] %v410
    %443 = vst [vmem:[%s3 + $0x34] sm:$0xf] %v411
    %444 = vst [vmem:[%s3 + $0x38] sm:$0xf] %v412
    %445 = vst [vmem:[%s3 + $0x3c] sm:$0xf] %v413
  $region21: #{mpr_model_forward.14} parent=0 // pred_fallthru
    _
  // Predicated region
  $region22: #{mpr_model_forward.14} parent=0 // pred_check
    _
  $region23: #{mpr_model_forward.14} parent=0 // pred_check_branch
    %447 = sbr.rel (0) target = $region25
  $region24: #{mpr_model_forward.14} parent=0 // pred_region
    _
  $region25: #{mpr_model_forward.14} parent=0 // pred_fallthru
    _
  // Predicated region
  $region26: #{mpr_model_forward.14} parent=0 // pred_check
    _
  $region27: #{mpr_model_forward.14} parent=0 // pred_check_branch
    %449 = sbr.rel (0) target = $region29
  $region28: #{mpr_model_forward.14} parent=0 // pred_region
    _
  $region29: #{mpr_model_forward.14} parent=0 // pred_fallthru
    _

// kernel: mpr_model_forward.15
$region0: #{mpr_model_forward.15}
  #allocation0 [shape = 'u32[]', space=smem, size = 0x4, offset = 0x4, fixed_abs, tag = 'smem constant byte address 0x4 - core index']
  #allocation1 [shape = 'u32[144,128]{1,0:T(1,128)}', space=vmem, size = 0x12000, scoped, tag = 'internal scratch']
  #allocation2 [shape = 'f32[128,128]{1,0:T(8,128)}', space=vmem, size = 0x10000, scoped, tag = 'scratch operand']
  %s0 = inlined_call_operand.vmem [shape: bf16[128,128], index: 0, kind: input, shape index: {}]
  %s1 = inlined_call_operand.vmem [shape: bf16[128,128], index: 1, kind: input, shape index: {}]
  %s2 = inlined_call_operand.vmem [shape: f32[1,128], index: 2, kind: input, shape index: {}]
  %s3 = inlined_call_operand.vmem [shape: bf16[128,128], index: 3, kind: output, shape index: {}]
  %s4 = sld [smem:[#allocation0]]
  $region30: #{mpr_model_forward.15} parent=0
    _
  %s6 = ssub.s32 1, %s4
  %s7 = scalar_select 0, %s6, %s4
  // Predicated region
  $region2: #{mpr_model_forward.15} parent=0 // pred_check
    _
  $region3: #{mpr_model_forward.15} parent=0 // pred_check_branch
    %9 = sbr.rel (0) target = $region5
  $region4: #{mpr_model_forward.15} parent=0 // pred_region
    _
  $region5: #{mpr_model_forward.15} parent=0 // pred_fallthru
    _
  // Predicated region
  $region6: #{mpr_model_forward.15} parent=0 // pred_check
    _
  $region7: #{mpr_model_forward.15} parent=0 // pred_check_branch
    %11 = sbr.rel (0) target = $region9
  $region8: #{mpr_model_forward.15} parent=0 // pred_region
    _
  $region9: #{mpr_model_forward.15} parent=0 // pred_fallthru
    _
  // Predicated region
  $region10: #{mpr_model_forward.15} parent=0 // pred_check
    _
  $region11: #{mpr_model_forward.15} parent=0 // pred_check_branch
    %13 = sbr.rel (0) target = $region13
  $region12: #{mpr_model_forward.15} parent=0 // pred_region
    _
  $region13: #{mpr_model_forward.15} parent=0 // pred_fallthru
    _
  %p15 = scmp.eq.s32.totalorder 0, 0
  // Predicated region
  $region14: #{mpr_model_forward.15} parent=0 // pred_check
    %p16 = pneg %p15
  $region15: #{mpr_model_forward.15} parent=0 // pred_check_branch
    %18 = sbr.rel (%p16) target = $region17
  $region16: #{mpr_model_forward.15} parent=0 // pred_region
    %19 = vst [vmem:[#allocation2] sm:$0xff] 0.0
    %20 = vst [vmem:[#allocation2 + $0x8] sm:$0xff] 0.0
    %21 = vst [vmem:[#allocation2 + $0x10] sm:$0xff] 0.0
    %22 = vst [vmem:[#allocation2 + $0x18] sm:$0xff] 0.0
    %23 = vst [vmem:[#allocation2 + $0x20] sm:$0xff] 0.0
    %24 = vst [vmem:[#allocation2 + $0x28] sm:$0xff] 0.0
    %25 = vst [vmem:[#allocation2 + $0x30] sm:$0xff] 0.0
    %26 = vst [vmem:[#allocation2 + $0x38] sm:$0xff] 0.0
    %27 = vst [vmem:[#allocation2 + $0x40] sm:$0xff] 0.0
    %28 = vst [vmem:[#allocation2 + $0x48] sm:$0xff] 0.0
    %29 = vst [vmem:[#allocation2 + $0x50] sm:$0xff] 0.0
    %30 = vst [vmem:[#allocation2 + $0x58] sm:$0xff] 0.0
    %31 = vst [vmem:[#allocation2 + $0x60] sm:$0xff] 0.0
    %32 = vst [vmem:[#allocation2 + $0x68] sm:$0xff] 0.0
    %33 = vst [vmem:[#allocation2 + $0x70] sm:$0xff] 0.0
    %34 = vst [vmem:[#allocation2 + $0x78] sm:$0xff] 0.0
  $region17: #{mpr_model_forward.15} parent=0 // pred_fallthru
    _
  %v35 = vld [vmem:[#allocation2] sm:$0xff]
  %v36 = vld [vmem:[#allocation2 + $0x8] sm:$0xff]
  %v37 = vld [vmem:[#allocation2 + $0x10] sm:$0xff]
  %v38 = vld [vmem:[#allocation2 + $0x18] sm:$0xff]
  %v39 = vld [vmem:[#allocation2 + $0x20] sm:$0xff]
  %v40 = vld [vmem:[#allocation2 + $0x28] sm:$0xff]
  %v41 = vld [vmem:[#allocation2 + $0x30] sm:$0xff]
  %v42 = vld [vmem:[#allocation2 + $0x38] sm:$0xff]
  %v43 = vld [vmem:[#allocation2 + $0x40] sm:$0xff]
  %v44 = vld [vmem:[#allocation2 + $0x48] sm:$0xff]
  %v45 = vld [vmem:[#allocation2 + $0x50] sm:$0xff]
  %v46 = vld [vmem:[#allocation2 + $0x58] sm:$0xff]
  %v47 = vld [vmem:[#allocation2 + $0x60] sm:$0xff]
  %v48 = vld [vmem:[#allocation2 + $0x68] sm:$0xff]
  %v49 = vld [vmem:[#allocation2 + $0x70] sm:$0xff]
  %v50 = vld [vmem:[#allocation2 + $0x78] sm:$0xff]
  %v51 = vld [vmem:[%s0] sm:$0xf]
  %v52 = vld [vmem:[%s0 + $0x4] sm:$0xf]
  %v53 = vld [vmem:[%s0 + $0x8] sm:$0xf]
  %v54 = vld [vmem:[%s0 + $0xc] sm:$0xf]
  %v55 = vld [vmem:[%s0 + $0x10] sm:$0xf]
  %v56 = vld [vmem:[%s0 + $0x14] sm:$0xf]
  %v57 = vld [vmem:[%s0 + $0x18] sm:$0xf]
  %v58 = vld [vmem:[%s0 + $0x1c] sm:$0xf]
  %v59 = vld [vmem:[%s0 + $0x20] sm:$0xf]
  %v60 = vld [vmem:[%s0 + $0x24] sm:$0xf]
  %v61 = vld [vmem:[%s0 + $0x28] sm:$0xf]
  %v62 = vld [vmem:[%s0 + $0x2c] sm:$0xf]
  %v63 = vld [vmem:[%s0 + $0x30] sm:$0xf]
  %v64 = vld [vmem:[%s0 + $0x34] sm:$0xf]
  %v65 = vld [vmem:[%s0 + $0x38] sm:$0xf]
  %v66 = vld [vmem:[%s0 + $0x3c] sm:$0xf]
  %v67 = vld [vmem:[%s1] sm:$0xf]
  %v68 = vld [vmem:[%s1 + $0x4] sm:$0xf]
  %v69 = vld [vmem:[%s1 + $0x8] sm:$0xf]
  %v70 = vld [vmem:[%s1 + $0xc] sm:$0xf]
  %v71 = vld [vmem:[%s1 + $0x10] sm:$0xf]
  %v72 = vld [vmem:[%s1 + $0x14] sm:$0xf]
  %v73 = vld [vmem:[%s1 + $0x18] sm:$0xf]
  %v74 = vld [vmem:[%s1 + $0x1c] sm:$0xf]
  %v75 = vld [vmem:[%s1 + $0x20] sm:$0xf]
  %v76 = vld [vmem:[%s1 + $0x24] sm:$0xf]
  %v77 = vld [vmem:[%s1 + $0x28] sm:$0xf]
  %v78 = vld [vmem:[%s1 + $0x2c] sm:$0xf]
  %v79 = vld [vmem:[%s1 + $0x30] sm:$0xf]
  %v80 = vld [vmem:[%s1 + $0x34] sm:$0xf]
  %v81 = vld [vmem:[%s1 + $0x38] sm:$0xf]
  %v82 = vld [vmem:[%s1 + $0x3c] sm:$0xf]
  %v99 = vunpack.c.l.b16 %v51
  %v100 = vunpack.c.l.b16 %v52
  %v101 = vunpack.c.l.b16 %v53
  %v102 = vunpack.c.l.b16 %v54
  %v103 = vunpack.c.l.b16 %v55
  %v104 = vunpack.c.l.b16 %v56
  %v105 = vunpack.c.l.b16 %v57
  %v106 = vunpack.c.l.b16 %v58
  %v107 = vunpack.c.l.b16 %v59
  %v108 = vunpack.c.l.b16 %v60
  %v109 = vunpack.c.l.b16 %v61
  %v110 = vunpack.c.l.b16 %v62
  %v111 = vunpack.c.l.b16 %v63
  %v112 = vunpack.c.l.b16 %v64
  %v113 = vunpack.c.l.b16 %v65
  %v114 = vunpack.c.l.b16 %v66
  %v115 = vpack.c.b16 %v100, %v99
  %v116 = vpack.c.b16 %v102, %v101
  %v117 = vpack.c.b16 %v104, %v103
  %v118 = vpack.c.b16 %v106, %v105
  %v119 = vpack.c.b16 %v108, %v107
  %v120 = vpack.c.b16 %v110, %v109
  %v121 = vpack.c.b16 %v112, %v111
  %v122 = vpack.c.b16 %v114, %v113
  %v147 = vunpack.c.l.b16 %v67
  %v148 = vunpack.c.l.b16 %v68
  %v149 = vunpack.c.l.b16 %v69
  %v150 = vunpack.c.l.b16 %v70
  %v151 = vunpack.c.l.b16 %v71
  %v152 = vunpack.c.l.b16 %v72
  %v153 = vunpack.c.l.b16 %v73
  %v154 = vunpack.c.l.b16 %v74
  %v155 = vunpack.c.l.b16 %v75
  %v156 = vunpack.c.l.b16 %v76
  %v157 = vunpack.c.l.b16 %v77
  %v158 = vunpack.c.l.b16 %v78
  %v159 = vunpack.c.l.b16 %v79
  %v160 = vunpack.c.l.b16 %v80
  %v161 = vunpack.c.l.b16 %v81
  %v162 = vunpack.c.l.b16 %v82
  %v163 = vpack.c.b16 %v148, %v147
  %v164 = vpack.c.b16 %v150, %v149
  %v165 = vpack.c.b16 %v152, %v151
  %v166 = vpack.c.b16 %v154, %v153
  %v167 = vpack.c.b16 %v156, %v155
  %v168 = vpack.c.b16 %v158, %v157
  %v169 = vpack.c.b16 %v160, %v159
  %v170 = vpack.c.b16 %v162, %v161
  %179 = vmatprep.subr.bf16.mxu0 0
  %180 = vmatpush1.bf16.msra.mxu0 %v163
  %181 = vmatprep.subr.bf16.mxu0 0
  %182 = vmatpush1.bf16.msra.mxu0 %v164
  %183 = vmatprep.subr.bf16.mxu0 0
  %184 = vmatpush1.bf16.msra.mxu0 %v165
  %185 = vmatprep.subr.bf16.mxu0 0
  %186 = vmatpush1.bf16.msra.mxu0 %v166
  %187 = vmatprep.subr.bf16.mxu0 0
  %188 = vmatpush1.bf16.msra.mxu0 %v167
  %189 = vmatprep.subr.bf16.mxu0 0
  %190 = vmatpush1.bf16.msra.mxu0 %v168
  %191 = vmatprep.subr.bf16.mxu0 0
  %192 = vmatpush1.bf16.msra.mxu0 %v169
  %193 = vmatprep.subr.bf16.mxu0 0
  %194 = vmatpush1.bf16.msra.mxu0 %v170
  %195 = vmatprep.subr.bf16.mxu0 0
  %196 = vmatpush1.bf16.msra.mxu0 0
  %197 = vmatprep.subr.bf16.mxu0 0
  %198 = vmatpush1.bf16.msra.mxu0 0
  %199 = vmatprep.subr.bf16.mxu0 0
  %200 = vmatpush1.bf16.msra.mxu0 0
  %201 = vmatprep.subr.bf16.mxu0 0
  %202 = vmatpush1.bf16.msra.mxu0 0
  %203 = vmatprep.subr.bf16.mxu0 0
  %204 = vmatpush1.bf16.msra.mxu0 0
  %205 = vmatprep.subr.bf16.mxu0 0
  %206 = vmatpush1.bf16.msra.mxu0 0
  %207 = vmatprep.subr.bf16.mxu0 0
  %208 = vmatpush1.bf16.msra.mxu0 0
  %209 = vmatprep.subr.bf16.mxu0 0
  %210 = vmatpush1.bf16.msra.mxu0 0
  %211 = vmatprep.mubr.bf16.mxu0 0
  %212 = vmatmul.mubr.bf16.gmra.mrb[0].mxu0 %v115
  %v213 = vpop.f32.mrb[0].mxu0
  %v214 = vadd.f32 0.0, %v213
  %v215 = vpop.f32.mrb[0].mxu0
  %v216 = vpop.f32.mrb[0].mxu0
  %v217 = vadd.f32 0.0, %v216
  %v218 = vpop.f32.mrb[0].mxu0
  %219 = vmatprep.mubr.bf16.mxu0 0
  %220 = vmatmul.mubr.bf16.gmra.mrb[0].mxu0 %v116
  %v221 = vpop.f32.mrb[0].mxu0
  %v222 = vadd.f32 0.0, %v221
  %v223 = vpop.f32.mrb[0].mxu0
  %v224 = vpop.f32.mrb[0].mxu0
  %v225 = vadd.f32 0.0, %v224
  %v226 = vpop.f32.mrb[0].mxu0
  %227 = vmatprep.mubr.bf16.mxu0 0
  %228 = vmatmul.mubr.bf16.gmra.mrb[0].mxu0 %v117
  %v229 = vpop.f32.mrb[0].mxu0
  %v230 = vadd.f32 0.0, %v229
  %v231 = vpop.f32.mrb[0].mxu0
  %v232 = vpop.f32.mrb[0].mxu0
  %v233 = vadd.f32 0.0, %v232
  %v234 = vpop.f32.mrb[0].mxu0
  %235 = vmatprep.mubr.bf16.mxu0 0
  %236 = vmatmul.mubr.bf16.gmra.mrb[0].mxu0 %v118
  %v237 = vpop.f32.mrb[0].mxu0
  %v238 = vadd.f32 0.0, %v237
  %v239 = vpop.f32.mrb[0].mxu0
  %v240 = vpop.f32.mrb[0].mxu0
  %v241 = vadd.f32 0.0, %v240
  %v242 = vpop.f32.mrb[0].mxu0
  %243 = vmatprep.mubr.bf16.mxu0 0
  %244 = vmatmul.mubr.bf16.gmra.mrb[0].mxu0 %v119
  %v245 = vpop.f32.mrb[0].mxu0
  %v246 = vadd.f32 0.0, %v245
  %v247 = vpop.f32.mrb[0].mxu0
  %v248 = vpop.f32.mrb[0].mxu0
  %v249 = vadd.f32 0.0, %v248
  %v250 = vpop.f32.mrb[0].mxu0
  %251 = vmatprep.mubr.bf16.mxu0 0
  %252 = vmatmul.mubr.bf16.gmra.mrb[0].mxu0 %v120
  %v253 = vpop.f32.mrb[0].mxu0
  %v254 = vadd.f32 0.0, %v253
  %v255 = vpop.f32.mrb[0].mxu0
  %v256 = vpop.f32.mrb[0].mxu0
  %v257 = vadd.f32 0.0, %v256
  %v258 = vpop.f32.mrb[0].mxu0
  %259 = vmatprep.mubr.bf16.mxu0 0
  %260 = vmatmul.mubr.bf16.gmra.mrb[0].mxu0 %v121
  %v261 = vpop.f32.mrb[0].mxu0
  %v262 = vadd.f32 0.0, %v261
  %v263 = vpop.f32.mrb[0].mxu0
  %v264 = vpop.f32.mrb[0].mxu0
  %v265 = vadd.f32 0.0, %v264
  %v266 = vpop.f32.mrb[0].mxu0
  %267 = vmatprep.mubr.bf16.mxu0 0
  %268 = vmatmul.mubr.bf16.gmra.mrb[0].mxu0 %v122
  %v269 = vpop.f32.mrb[0].mxu0
  %v270 = vadd.f32 0.0, %v269
  %v271 = vpop.f32.mrb[0].mxu0
  %v272 = vpop.f32.mrb[0].mxu0
  %v273 = vadd.f32 0.0, %v272
  %v274 = vpop.f32.mrb[0].mxu0
  %275 = vdwg.mxu0
  %v276 = vadd.f32 %v35, %v214
  %v277 = vadd.f32 %v36, %v217
  %v278 = vadd.f32 %v37, %v222
  %v279 = vadd.f32 %v38, %v225
  %v280 = vadd.f32 %v39, %v230
  %v281 = vadd.f32 %v40, %v233
  %v282 = vadd.f32 %v41, %v238
  %v283 = vadd.f32 %v42, %v241
  %v284 = vadd.f32 %v43, %v246
  %v285 = vadd.f32 %v44, %v249
  %v286 = vadd.f32 %v45, %v254
  %v287 = vadd.f32 %v46, %v257
  %v288 = vadd.f32 %v47, %v262
  %v289 = vadd.f32 %v48, %v265
  %v290 = vadd.f32 %v49, %v270
  %v291 = vadd.f32 %v50, %v273
  %292 = vst [vmem:[#allocation2] sm:$0xff] %v276
  %293 = vst [vmem:[#allocation2 + $0x8] sm:$0xff] %v277
  %294 = vst [vmem:[#allocation2 + $0x10] sm:$0xff] %v278
  %295 = vst [vmem:[#allocation2 + $0x18] sm:$0xff] %v279
  %296 = vst [vmem:[#allocation2 + $0x20] sm:$0xff] %v280
  %297 = vst [vmem:[#allocation2 + $0x28] sm:$0xff] %v281
  %298 = vst [vmem:[#allocation2 + $0x30] sm:$0xff] %v282
  %299 = vst [vmem:[#allocation2 + $0x38] sm:$0xff] %v283
  %300 = vst [vmem:[#allocation2 + $0x40] sm:$0xff] %v284
  %301 = vst [vmem:[#allocation2 + $0x48] sm:$0xff] %v285
  %302 = vst [vmem:[#allocation2 + $0x50] sm:$0xff] %v286
  %303 = vst [vmem:[#allocation2 + $0x58] sm:$0xff] %v287
  %304 = vst [vmem:[#allocation2 + $0x60] sm:$0xff] %v288
  %305 = vst [vmem:[#allocation2 + $0x68] sm:$0xff] %v289
  %306 = vst [vmem:[#allocation2 + $0x70] sm:$0xff] %v290
  %307 = vst [vmem:[#allocation2 + $0x78] sm:$0xff] %v291
  // Predicated region
  $region18: #{mpr_model_forward.15} parent=0 // pred_check
    %p308 = pneg %p15
  $region19: #{mpr_model_forward.15} parent=0 // pred_check_branch
    %310 = sbr.rel (%p308) target = $region21
  $region20: #{mpr_model_forward.15} parent=0 // pred_region
    %v311 = vld [vmem:[#allocation2] sm:$0xff]
    %v312 = vld [vmem:[#allocation2 + $0x8] sm:$0xff]
    %v313 = vld [vmem:[#allocation2 + $0x10] sm:$0xff]
    %v314 = vld [vmem:[#allocation2 + $0x18] sm:$0xff]
    %v315 = vld [vmem:[#allocation2 + $0x20] sm:$0xff]
    %v316 = vld [vmem:[#allocation2 + $0x28] sm:$0xff]
    %v317 = vld [vmem:[#allocation2 + $0x30] sm:$0xff]
    %v318 = vld [vmem:[#allocation2 + $0x38] sm:$0xff]
    %v319 = vld [vmem:[#allocation2 + $0x40] sm:$0xff]
    %v320 = vld [vmem:[#allocation2 + $0x48] sm:$0xff]
    %v321 = vld [vmem:[#allocation2 + $0x50] sm:$0xff]
    %v322 = vld [vmem:[#allocation2 + $0x58] sm:$0xff]
    %v323 = vld [vmem:[#allocation2 + $0x60] sm:$0xff]
    %v324 = vld [vmem:[#allocation2 + $0x68] sm:$0xff]
    %v325 = vld [vmem:[#allocation2 + $0x70] sm:$0xff]
    %v326 = vld [vmem:[#allocation2 + $0x78] sm:$0xff]
    %v327 = vld [vmem:[%s2] sm:$0x1]
    %v329 = vlaneseq
    %v330 = vshrl.u32 %v329, 7
    %v331 = vsub.s32 0, %v330
    %v332 = vrot.slane %v327, %v331
    %v334 = vadd.f32 %v311, %v332
    %v335 = vadd.f32 %v312, %v332
    %v336 = vadd.f32 %v313, %v332
    %v337 = vadd.f32 %v314, %v332
    %v338 = vadd.f32 %v315, %v332
    %v339 = vadd.f32 %v316, %v332
    %v340 = vadd.f32 %v317, %v332
    %v341 = vadd.f32 %v318, %v332
    %v342 = vadd.f32 %v319, %v332
    %v343 = vadd.f32 %v320, %v332
    %v344 = vadd.f32 %v321, %v332
    %v345 = vadd.f32 %v322, %v332
    %v346 = vadd.f32 %v323, %v332
    %v347 = vadd.f32 %v324, %v332
    %v348 = vadd.f32 %v325, %v332
    %v349 = vadd.f32 %v326, %v332
    %v350 = vpack.c.bf16 %v335, %v334
    %v351 = vpack.c.bf16 %v337, %v336
    %v352 = vpack.c.bf16 %v339, %v338
    %v353 = vpack.c.bf16 %v341, %v340
    %v354 = vpack.c.bf16 %v343, %v342
    %v355 = vpack.c.bf16 %v345, %v344
    %v356 = vpack.c.bf16 %v347, %v346
    %v357 = vpack.c.bf16 %v349, %v348
    %v366 = vunpack.c.l.b16 %v350
    %v367 = vunpack.c.h.b16 %v350
    %v368 = vunpack.c.l.b16 %v351
    %v369 = vunpack.c.h.b16 %v351
    %v370 = vunpack.c.l.b16 %v352
    %v371 = vunpack.c.h.b16 %v352
    %v372 = vunpack.c.l.b16 %v353
    %v373 = vunpack.c.h.b16 %v353
    %v374 = vunpack.c.l.b16 %v354
    %v375 = vunpack.c.h.b16 %v354
    %v376 = vunpack.c.l.b16 %v355
    %v377 = vunpack.c.h.b16 %v355
    %v378 = vunpack.c.l.b16 %v356
    %v379 = vunpack.c.h.b16 %v356
    %v380 = vunpack.c.l.b16 %v357
    %v381 = vunpack.c.h.b16 %v357
    %v382 = vpack.c.b16 %v366, %v366
    %v383 = vpack.c.b16 %v367, %v367
    %v384 = vpack.c.b16 %v368, %v368
    %v385 = vpack.c.b16 %v369, %v369
    %v386 = vpack.c.b16 %v370, %v370
    %v387 = vpack.c.b16 %v371, %v371
    %v388 = vpack.c.b16 %v372, %v372
    %v389 = vpack.c.b16 %v373, %v373
    %v390 = vpack.c.b16 %v374, %v374
    %v391 = vpack.c.b16 %v375, %v375
    %v392 = vpack.c.b16 %v376, %v376
    %v393 = vpack.c.b16 %v377, %v377
    %v394 = vpack.c.b16 %v378, %v378
    %v395 = vpack.c.b16 %v379, %v379
    %v396 = vpack.c.b16 %v380, %v380
    %v397 = vpack.c.b16 %v381, %v381
    %414 = vst [vmem:[%s3] sm:$0xf] %v382
    %415 = vst [vmem:[%s3 + $0x4] sm:$0xf] %v383
    %416 = vst [vmem:[%s3 + $0x8] sm:$0xf] %v384
    %417 = vst [vmem:[%s3 + $0xc] sm:$0xf] %v385
    %418 = vst [vmem:[%s3 + $0x10] sm:$0xf] %v386
    %419 = vst [vmem:[%s3 + $0x14] sm:$0xf] %v387
    %420 = vst [vmem:[%s3 + $0x18] sm:$0xf] %v388
    %421 = vst [vmem:[%s3 + $0x1c] sm:$0xf] %v389
    %422 = vst [vmem:[%s3 + $0x20] sm:$0xf] %v390
    %423 = vst [vmem:[%s3 + $0x24] sm:$0xf] %v391
    %424 = vst [vmem:[%s3 + $0x28] sm:$0xf] %v392
    %425 = vst [vmem:[%s3 + $0x2c] sm:$0xf] %v393
    %426 = vst [vmem:[%s3 + $0x30] sm:$0xf] %v394
    %427 = vst [vmem:[%s3 + $0x34] sm:$0xf] %v395
    %428 = vst [vmem:[%s3 + $0x38] sm:$0xf] %v396
    %429 = vst [vmem:[%s3 + $0x3c] sm:$0xf] %v397
  $region21: #{mpr_model_forward.15} parent=0 // pred_fallthru
    _
  // Predicated region
  $region22: #{mpr_model_forward.15} parent=0 // pred_check
    _
  $region23: #{mpr_model_forward.15} parent=0 // pred_check_branch
    %431 = sbr.rel (0) target = $region25
  $region24: #{mpr_model_forward.15} parent=0 // pred_region
    _
  $region25: #{mpr_model_forward.15} parent=0 // pred_fallthru
    _
  // Predicated region
  $region26: #{mpr_model_forward.15} parent=0 // pred_check
    _
  $region27: #{mpr_model_forward.15} parent=0 // pred_check_branch
    %433 = sbr.rel (0) target = $region29
  $region28: #{mpr_model_forward.15} parent=0 // pred_region
    _
  $region29: #{mpr_model_forward.15} parent=0 // pred_fallthru
    _

// kernel: mpr_model_forward.25
$region0: #{mpr_model_forward.25}
  #allocation0 [shape = 'u32[]', space=smem, size = 0x4, offset = 0x4, fixed_abs, tag = 'smem constant byte address 0x4 - core index']
  #allocation1 [shape = 'u32[144,128]{1,0:T(1,128)}', space=vmem, size = 0x12000, scoped, tag = 'internal scratch']
  #allocation2 [shape = 'f32[1,128]{1,0:T(1,128)}', space=vmem, size = 0x200, scoped, tag = 'scratch operand']
  %s0 = inlined_call_operand.vmem [shape: bf16[128,128], index: 0, kind: input, shape index: {}]
  %s1 = inlined_call_operand.vmem [shape: bf16[128,128], index: 1, kind: input, shape index: {}]
  %s2 = inlined_call_operand.vmem [shape: f32[1,128], index: 2, kind: input, shape index: {}]
  %s3 = inlined_call_operand.vmem [shape: f32[8,128], index: 3, kind: output, shape index: {}]
  %s4 = sld [smem:[#allocation0]]
  $region30: #{mpr_model_forward.25} parent=0
    _
  %s6 = ssub.s32 1, %s4
  %s7 = scalar_select 0, %s6, %s4
  // Predicated region
  $region2: #{mpr_model_forward.25} parent=0 // pred_check
    _
  $region3: #{mpr_model_forward.25} parent=0 // pred_check_branch
    %9 = sbr.rel (0) target = $region5
  $region4: #{mpr_model_forward.25} parent=0 // pred_region
    _
  $region5: #{mpr_model_forward.25} parent=0 // pred_fallthru
    _
  // Predicated region
  $region6: #{mpr_model_forward.25} parent=0 // pred_check
    _
  $region7: #{mpr_model_forward.25} parent=0 // pred_check_branch
    %11 = sbr.rel (0) target = $region9
  $region8: #{mpr_model_forward.25} parent=0 // pred_region
    _
  $region9: #{mpr_model_forward.25} parent=0 // pred_fallthru
    _
  // Predicated region
  $region10: #{mpr_model_forward.25} parent=0 // pred_check
    _
  $region11: #{mpr_model_forward.25} parent=0 // pred_check_branch
    %13 = sbr.rel (0) target = $region13
  $region12: #{mpr_model_forward.25} parent=0 // pred_region
    _
  $region13: #{mpr_model_forward.25} parent=0 // pred_fallthru
    _
  %p15 = scmp.eq.s32.totalorder 0, 0
  // Predicated region
  $region14: #{mpr_model_forward.25} parent=0 // pred_check
    %p16 = pneg %p15
  $region15: #{mpr_model_forward.25} parent=0 // pred_check_branch
    %18 = sbr.rel (%p16) target = $region17
  $region16: #{mpr_model_forward.25} parent=0 // pred_region
    %19 = vst [vmem:[#allocation2] sm:$0x1] 0.0
  $region17: #{mpr_model_forward.25} parent=0 // pred_fallthru
    _
  %v20 = vld [vmem:[%s0] sm:$0xf]
  %v21 = vld [vmem:[%s0 + $0x4] sm:$0xf]
  %v22 = vld [vmem:[%s0 + $0x8] sm:$0xf]
  %v23 = vld [vmem:[%s0 + $0xc] sm:$0xf]
  %v24 = vld [vmem:[%s0 + $0x10] sm:$0xf]
  %v25 = vld [vmem:[%s0 + $0x14] sm:$0xf]
  %v26 = vld [vmem:[%s0 + $0x18] sm:$0xf]
  %v27 = vld [vmem:[%s0 + $0x1c] sm:$0xf]
  %v28 = vld [vmem:[%s0 + $0x20] sm:$0xf]
  %v29 = vld [vmem:[%s0 + $0x24] sm:$0xf]
  %v30 = vld [vmem:[%s0 + $0x28] sm:$0xf]
  %v31 = vld [vmem:[%s0 + $0x2c] sm:$0xf]
  %v32 = vld [vmem:[%s0 + $0x30] sm:$0xf]
  %v33 = vld [vmem:[%s0 + $0x34] sm:$0xf]
  %v34 = vld [vmem:[%s0 + $0x38] sm:$0xf]
  %v35 = vld [vmem:[%s0 + $0x3c] sm:$0xf]
  %v36 = vunpack.c.l.bf16 %v20
  %v37 = vunpack.c.l.bf16 %v21
  %v38 = vunpack.c.l.bf16 %v22
  %v39 = vunpack.c.l.bf16 %v23
  %v40 = vunpack.c.l.bf16 %v24
  %v41 = vunpack.c.l.bf16 %v25
  %v42 = vunpack.c.l.bf16 %v26
  %v43 = vunpack.c.l.bf16 %v27
  %v44 = vunpack.c.l.bf16 %v28
  %v45 = vunpack.c.l.bf16 %v29
  %v46 = vunpack.c.l.bf16 %v30
  %v47 = vunpack.c.l.bf16 %v31
  %v48 = vunpack.c.l.bf16 %v32
  %v49 = vunpack.c.l.bf16 %v33
  %v50 = vunpack.c.l.bf16 %v34
  %v51 = vunpack.c.l.bf16 %v35
  %v52 = vlaneseq
  %v53 = vshrl.u32 %v52, 7
  %v54 = vadd.s32 %v53, 8
  %v55 = vadd.s32 %v53, 16
  %v56 = vadd.s32 %v53, 24
  %v57 = vadd.s32 %v53, 32
  %v58 = vadd.s32 %v53, 40
  %v59 = vadd.s32 %v53, 48
  %v60 = vadd.s32 %v53, 56
  %v61 = vadd.s32 %v53, 64
  %v62 = vadd.s32 %v53, 72
  %v63 = vadd.s32 %v53, 80
  %v64 = vadd.s32 %v53, 88
  %v65 = vadd.s32 %v53, 96
  %v66 = vadd.s32 %v53, 104
  %v67 = vadd.s32 %v53, 112
  %v68 = vadd.s32 %v53, 120
  %s69 = smul.u32 0, 128
  %v70 = vstv %s69
  %v71 = vadd.s32 %v53, %v70
  %v72 = vadd.s32 %v54, %v70
  %v73 = vadd.s32 %v55, %v70
  %v74 = vadd.s32 %v56, %v70
  %v75 = vadd.s32 %v57, %v70
  %v76 = vadd.s32 %v58, %v70
  %v77 = vadd.s32 %v59, %v70
  %v78 = vadd.s32 %v60, %v70
  %v79 = vadd.s32 %v61, %v70
  %v80 = vadd.s32 %v62, %v70
  %v81 = vadd.s32 %v63, %v70
  %v82 = vadd.s32 %v64, %v70
  %v83 = vadd.s32 %v65, %v70
  %v84 = vadd.s32 %v66, %v70
  %v85 = vadd.s32 %v67, %v70
  %v86 = vadd.s32 %v68, %v70
  %vm87 = vcmp.lt.s32.totalorder %v71, 24
  %vm88 = vcmp.lt.s32.totalorder %v72, 24
  %vm89 = vcmp.lt.s32.totalorder %v73, 24
  %vm90 = vcmp.lt.s32.totalorder %v74, 24
  %vm91 = vcmp.lt.s32.totalorder %v75, 24
  %vm92 = vcmp.lt.s32.totalorder %v76, 24
  %vm93 = vcmp.lt.s32.totalorder %v77, 24
  %vm94 = vcmp.lt.s32.totalorder %v78, 24
  %vm95 = vcmp.lt.s32.totalorder %v79, 24
  %vm96 = vcmp.lt.s32.totalorder %v80, 24
  %vm97 = vcmp.lt.s32.totalorder %v81, 24
  %vm98 = vcmp.lt.s32.totalorder %v82, 24
  %vm99 = vcmp.lt.s32.totalorder %v83, 24
  %vm100 = vcmp.lt.s32.totalorder %v84, 24
  %vm101 = vcmp.lt.s32.totalorder %v85, 24
  %vm102 = vcmp.lt.s32.totalorder %v86, 24
  %v103 = vsel %vm87, %v36, 0.0
  %v104 = vsel %vm88, %v37, 0.0
  %v105 = vsel %vm89, %v38, 0.0
  %v106 = vsel %vm90, %v39, 0.0
  %v107 = vsel %vm91, %v40, 0.0
  %v108 = vsel %vm92, %v41, 0.0
  %v109 = vsel %vm93, %v42, 0.0
  %v110 = vsel %vm94, %v43, 0.0
  %v111 = vsel %vm95, %v44, 0.0
  %v112 = vsel %vm96, %v45, 0.0
  %v113 = vsel %vm97, %v46, 0.0
  %v114 = vsel %vm98, %v47, 0.0
  %v115 = vsel %vm99, %v48, 0.0
  %v116 = vsel %vm100, %v49, 0.0
  %v117 = vsel %vm101, %v50, 0.0
  %v118 = vsel %vm102, %v51, 0.0
  %v119 = vld [vmem:[#allocation2] sm:$0x1]
  %v120 = vadd.f32 %v103, %v104
  %v121 = vadd.f32 %v120, %v105
  %v122 = vadd.f32 %v121, %v106
  %v123 = vadd.f32 %v122, %v107
  %v124 = vadd.f32 %v123, %v108
  %v125 = vadd.f32 %v124, %v109
  %v126 = vadd.f32 %v125, %v110
  %v127 = vadd.f32 %v126, %v111
  %v128 = vadd.f32 %v127, %v112
  %v129 = vadd.f32 %v128, %v113
  %v130 = vadd.f32 %v129, %v114
  %v131 = vadd.f32 %v130, %v115
  %v132 = vadd.f32 %v131, %v116
  %v133 = vadd.f32 %v132, %v117
  %v134 = vadd.f32 %v133, %v118
  %v135 = vrot.slane %v134, 4
  %v136 = vadd.f32 %v134, %v135
  %v137 = vrot.slane %v136, 2
  %v138 = vadd.f32 %v136, %v137
  %v139 = vrot.slane %v138, 1
  %v140 = vadd.f32 %v138, %v139
  %v141 = vadd.f32 %v119, %v140
  %142 = vst [vmem:[#allocation2] sm:$0x1] %v141
  // Predicated region
  $region18: #{mpr_model_forward.25} parent=0 // pred_check
    %p143 = pneg %p15
  $region19: #{mpr_model_forward.25} parent=0 // pred_check_branch
    %145 = sbr.rel (%p143) target = $region21
  $region20: #{mpr_model_forward.25} parent=0 // pred_region
    %v146 = vld [vmem:[#allocation2] sm:$0x1]
    %v147 = vmul.f32 %v146, 0.041666668
    %v148 = vpack.c.bf16 %v147, %v147
    %v150 = vpack.i.b16 %v148, %v148
    %v152 = vlaneseq
    %v153 = vshrl.u32 %v152, 7
    %v154 = vsub.s32 0, %v153
    %v155 = vrot.slane %v150, %v154
    %v156 = vld [vmem:[%s1] sm:$0xf]
    %v157 = vld [vmem:[%s1 + $0x4] sm:$0xf]
    %v158 = vld [vmem:[%s1 + $0x8] sm:$0xf]
    %v159 = vld [vmem:[%s1 + $0xc] sm:$0xf]
    %v160 = vld [vmem:[%s1 + $0x10] sm:$0xf]
    %v161 = vld [vmem:[%s1 + $0x14] sm:$0xf]
    %v162 = vld [vmem:[%s1 + $0x18] sm:$0xf]
    %v163 = vld [vmem:[%s1 + $0x1c] sm:$0xf]
    %v164 = vld [vmem:[%s1 + $0x20] sm:$0xf]
    %v165 = vld [vmem:[%s1 + $0x24] sm:$0xf]
    %v166 = vld [vmem:[%s1 + $0x28] sm:$0xf]
    %v167 = vld [vmem:[%s1 + $0x2c] sm:$0xf]
    %v168 = vld [vmem:[%s1 + $0x30] sm:$0xf]
    %v169 = vld [vmem:[%s1 + $0x34] sm:$0xf]
    %v170 = vld [vmem:[%s1 + $0x38] sm:$0xf]
    %v171 = vld [vmem:[%s1 + $0x3c] sm:$0xf]
    %v172 = vld [vmem:[%s2] sm:$0x1]
    %v174 = vlaneseq
    %v175 = vshrl.u32 %v174, 7
    %v176 = vsub.s32 0, %v175
    %v177 = vrot.slane %v172, %v176
    %v195 = vunpack.c.l.b16 %v156
    %v196 = vunpack.c.l.b16 %v157
    %v197 = vunpack.c.l.b16 %v158
    %v198 = vunpack.c.l.b16 %v159
    %v199 = vunpack.c.l.b16 %v160
    %v200 = vunpack.c.l.b16 %v161
    %v201 = vunpack.c.l.b16 %v162
    %v202 = vunpack.c.l.b16 %v163
    %v203 = vunpack.c.l.b16 %v164
    %v204 = vunpack.c.l.b16 %v165
    %v205 = vunpack.c.l.b16 %v166
    %v206 = vunpack.c.l.b16 %v167
    %v207 = vunpack.c.l.b16 %v168
    %v208 = vunpack.c.l.b16 %v169
    %v209 = vunpack.c.l.b16 %v170
    %v210 = vunpack.c.l.b16 %v171
    %v211 = vpack.c.b16 %v196, %v195
    %v212 = vpack.c.b16 %v198, %v197
    %v213 = vpack.c.b16 %v200, %v199
    %v214 = vpack.c.b16 %v202, %v201
    %v215 = vpack.c.b16 %v204, %v203
    %v216 = vpack.c.b16 %v206, %v205
    %v217 = vpack.c.b16 %v208, %v207
    %v218 = vpack.c.b16 %v210, %v209
    %227 = vmatprep.subr.bf16.mxu0 0
    %228 = vmatpush1.bf16.msra.mxu0 %v211
    %229 = vmatprep.subr.bf16.mxu0 0
    %230 = vmatpush1.bf16.msra.mxu0 %v212
    %231 = vmatprep.subr.bf16.mxu0 0
    %232 = vmatpush1.bf16.msra.mxu0 %v213
    %233 = vmatprep.subr.bf16.mxu0 0
    %234 = vmatpush1.bf16.msra.mxu0 %v214
    %235 = vmatprep.subr.bf16.mxu0 0
    %236 = vmatpush1.bf16.msra.mxu0 %v215
    %237 = vmatprep.subr.bf16.mxu0 0
    %238 = vmatpush1.bf16.msra.mxu0 %v216
    %239 = vmatprep.subr.bf16.mxu0 0
    %240 = vmatpush1.bf16.msra.mxu0 %v217
    %241 = vmatprep.subr.bf16.mxu0 0
    %242 = vmatpush1.bf16.msra.mxu0 %v218
    %243 = vmatprep.subr.bf16.mxu0 0
    %244 = vmatpush1.bf16.msra.mxu0 0
    %245 = vmatprep.subr.bf16.mxu0 0
    %246 = vmatpush1.bf16.msra.mxu0 0
    %247 = vmatprep.subr.bf16.mxu0 0
    %248 = vmatpush1.bf16.msra.mxu0 0
    %249 = vmatprep.subr.bf16.mxu0 0
    %250 = vmatpush1.bf16.msra.mxu0 0
    %251 = vmatprep.subr.bf16.mxu0 0
    %252 = vmatpush1.bf16.msra.mxu0 0
    %253 = vmatprep.subr.bf16.mxu0 0
    %254 = vmatpush1.bf16.msra.mxu0 0
    %255 = vmatprep.subr.bf16.mxu0 0
    %256 = vmatpush1.bf16.msra.mxu0 0
    %257 = vmatprep.subr.bf16.mxu0 0
    %258 = vmatpush1.bf16.msra.mxu0 0
    %259 = vmatprep.mubr.bf16.mxu0 0
    %260 = vmatmul.mubr.bf16.gmra.mrb[0].mxu0 %v155
    %v261 = vpop.f32.mrb[0].mxu0
    %v262 = vadd.f32 %v177, %v261
    %v263 = vpop.f32.mrb[0].mxu0
    %v264 = vpop.f32.mrb[0].mxu0
    %v265 = vpop.f32.mrb[0].mxu0
    %266 = vdwg.mxu0
    %267 = vst [vmem:[%s3] sm:$0xff] %v262
  $region21: #{mpr_model_forward.25} parent=0 // pred_fallthru
    _
  // Predicated region
  $region22: #{mpr_model_forward.25} parent=0 // pred_check
    _
  $region23: #{mpr_model_forward.25} parent=0 // pred_check_branch
    %269 = sbr.rel (0) target = $region25
  $region24: #{mpr_model_forward.25} parent=0 // pred_region
    _
  $region25: #{mpr_model_forward.25} parent=0 // pred_fallthru
    _
  // Predicated region
  $region26: #{mpr_model_forward.25} parent=0 // pred_check
    _
  $region27: #{mpr_model_forward.25} parent=0 // pred_check_branch
    %271 = sbr.rel (0) target = $region29
  $region28: #{mpr_model_forward.25} parent=0 // pred_region
    _
  $region29: #{mpr_model_forward.25} parent=0 // pred_fallthru
    _

</llo_original>
